<compile_context>
chip_gen: v5e
topology: v5e:2x2
jax: 0.10.0
libtpu: 0.0.40
codegen_flags: <defaults>
</compile_context>

<pallas_src>
import functools
import math

import jax
import jax.numpy as jnp
from jax.experimental import pallas as pl
from jax.experimental.pallas import tpu as pltpu


def _round_up(x, m):
    return ((x + m - 1) // m) * m


def _device_kind():
    try:
        return jax.devices()[0].device_kind.lower()
    except Exception:  # e.g. no TPU backend during tracing tools
        return ""


# ----------------------------------------------------------------------------
# Fused SpatialNL kernel
# ----------------------------------------------------------------------------
def _spatial_nl_kernel(x_ref,     # (1, S_pad, Cin) f32  full spatial extent of batch b
                       wt_ref,    # (Cin, Cp) bf16  (1/sqrt(Cp) pre-folded when use_scale)
                       wp_ref,    # (Cp, Cin) bf16  (original conv layout)
                       wg_ref,    # (Cin, Cp) bf16
                       wz_ref,    # (Cp, Cin) bf16  (BN scale pre-folded)
                       bias_ref,  # (1, Cin)  f32   (BN bias)
                       o_ref,     # (1, TQ, Cin) f32
                       p_scr,     # VMEM (Cp, S_pad) bf16  key projection, pre-transposed
                       g_scr,     # VMEM (S_pad, Cp) bf16  value projection
                       *, tq, s_valid, exp_bf16):
    qi = pl.program_id(1)
    s_pad = g_scr.shape[0]

    # Key/value projections: computed once per batch element (qi == 0) and
    # reused for every query tile.  p is written transposed so the per-tile
    # attention matmul below needs no transpose at all.
    @pl.when(qi == 0)
    def _():
        xk = x_ref[0].astype(jnp.bfloat16)                          # (S_pad, Cin)
        p_scr[...] = jax.lax.dot_general(                           # (Cp, S_pad)
            wp_ref[...], xk, (((1,), (1,)), ((), ())),
            preferred_element_type=jnp.float32).astype(p_scr.dtype)
        g_scr[...] = jnp.dot(                                       # (S_pad, Cp)
            xk, wg_ref[...],
            preferred_element_type=jnp.float32).astype(g_scr.dtype)

    # Query tile: residual kept in f32, matmul operands in bf16.
    q0 = pl.multiple_of(qi * tq, tq)
    xq32 = x_ref[0, pl.ds(q0, tq), :]                               # (TQ, Cin) f32
    xq = xq32.astype(jnp.bfloat16)

    t = jnp.dot(xq, wt_ref[...], preferred_element_type=jnp.float32)   # (TQ, Cp)
    att = jnp.dot(t.astype(jnp.bfloat16), p_scr[...],
                  preferred_element_type=jnp.float32)               # (TQ, S_pad)

    if s_valid != s_pad:   # mask padded keys (static: only emitted when padded)
        key_idx = jax.lax.broadcasted_iota(jnp.int32, att.shape, 1)
        att = jnp.where(key_idx < s_valid, att, -1e30)

    # Numerically-stable softmax; denominator folded into y (TQ, Cp) later.
    m = jnp.max(att, axis=-1, keepdims=True)
    s = att - m
    if exp_bf16:
        pexp = jnp.exp(s.astype(jnp.bfloat16))                      # bf16 EUP path
        denom = jnp.sum(pexp.astype(jnp.float32), axis=-1, keepdims=True)
    else:
        pf = jnp.exp(s)                                             # f32 EUP path
        denom = jnp.sum(pf, axis=-1, keepdims=True)
        pexp = pf.astype(jnp.bfloat16)

    y = jnp.dot(pexp, g_scr[...], preferred_element_type=jnp.float32)  # (TQ, Cp)
    y = y * pl.reciprocal(denom, approx=True)        # softmax normalization here
    out = jnp.dot(y.astype(jnp.bfloat16), wz_ref[...],
                  preferred_element_type=jnp.float32)               # (TQ, Cin)
    o_ref[0] = (out + bias_ref[...] + xq32).astype(o_ref.dtype)


# ----------------------------------------------------------------------------
# Wrapper
# ----------------------------------------------------------------------------
def spatial_nl_forward(x_nchw, params, use_scale=False):
    """Forward pass of SpatialNL. x_nchw: (N, Cin, H, W) f32. Returns same shape f32."""
    N, Cin, H, W = x_nchw.shape
    S = H * W
    Cp = params['t_w'].shape[0]

    kind = _device_kind()
    # bf16 exp ~doubles EUP throughput on v6e/v7x (the binding unit for small Cp);
    # v5e and older have no bf16 EUP, keep f32 there.
    exp_bf16 = ('v6' in kind) or ('v7' in kind)
    # tq=256 fills the 2x256x256 MXU and halves per-step overhead on v6e;
    # tq=128 elsewhere (v5e 4x128 MXU; v7x tighter 64 MiB VMEM budget).
    tq = 256 if 'v6' in kind else 128
    tq = min(tq, _round_up(S, 128))
    S_pad = _round_up(S, tq)

    # NCHW -> (N, S, Cin), single f32 array (cast to bf16 inside the kernel).
    # TODO(synk): keep activations NHWC across the surrounding network to avoid
    #             this extra HBM transpose pass.
    x_nsc = jnp.transpose(x_nchw, (0, 2, 3, 1)).reshape(N, S, Cin).astype(jnp.float32)
    if S_pad != S:
        x_nsc = jnp.pad(x_nsc, ((0, 0), (0, S_pad - S), (0, 0)))

    # Eval-mode BN folded into per-channel scale/bias; scale folded into Wz.
    bn_scale = params['bn_gamma'] * jax.lax.rsqrt(params['bn_var'] + params['bn_eps'])
    bn_bias = (params['bn_beta'] - params['bn_mean'] * bn_scale
               ).reshape(1, Cin).astype(jnp.float32)

    t_scale = (1.0 / math.sqrt(Cp)) if use_scale else 1.0   # folded into wt
    wt = (params['t_w'].T * t_scale).astype(jnp.bfloat16)               # (Cin, Cp)
    wp = params['p_w'].astype(jnp.bfloat16)                             # (Cp, Cin)
    wg = params['g_w'].T.astype(jnp.bfloat16)                           # (Cin, Cp)
    wz = (params['z_w'] * bn_scale[:, None]).T.astype(jnp.bfloat16)     # (Cp, Cin)

    n_tiles = S_pad // tq
    grid = (N, n_tiles)

    # Advisory cost / VMEM budget.
    flops = N * (4 * S_pad * Cin * Cp
                 + n_tiles * (4 * tq * Cin * Cp + 4 * tq * Cp * S_pad))
    transcendentals = N * S_pad * S_pad
    weight_bytes = 2 * (3 * Cin * Cp + Cp * Cin) + 4 * Cin
    bytes_accessed = 2 * N * S_pad * Cin * 4 + weight_bytes
    vmem_est = (2 * S_pad * Cin * 4               # x block (double-buffered)
                + 2 * weight_bytes                # weights (double-buffered)
                + 2 * 2 * S_pad * Cp              # p/g bf16 scratch
                + 2 * tq * Cin * 4                # output block (double-buffered)
                + 6 * tq * S_pad * 4)             # live (TQ,S) f32 intermediates
    vmem_limit = int(min(max(2 * vmem_est, 32 * 1024 * 1024), 60 * 1024 * 1024))

    kernel = functools.partial(_spatial_nl_kernel,
                               tq=tq, s_valid=S, exp_bf16=exp_bf16)

    out = pl.pallas_call(
        kernel,
        grid_spec=pltpu.PrefetchScalarGridSpec(
            num_scalar_prefetch=0,
            grid=grid,
            in_specs=[
                # Full spatial extent of batch b (re-DMA'd only when b changes).
                pl.BlockSpec((1, S_pad, Cin), lambda b, q: (b, 0, 0)),
                pl.BlockSpec((Cin, Cp), lambda b, q: (0, 0)),
                pl.BlockSpec((Cp, Cin), lambda b, q: (0, 0)),
                pl.BlockSpec((Cin, Cp), lambda b, q: (0, 0)),
                pl.BlockSpec((Cp, Cin), lambda b, q: (0, 0)),
                pl.BlockSpec((1, Cin), lambda b, q: (0, 0)),
            ],
            out_specs=pl.BlockSpec((1, tq, Cin), lambda b, q: (b, q, 0)),
            scratch_shapes=[
                pltpu.VMEM((Cp, S_pad), jnp.bfloat16),   # p projection (transposed)
                pltpu.VMEM((S_pad, Cp), jnp.bfloat16),   # g projection
            ],
        ),
        out_shape=jax.ShapeDtypeStruct((N, S_pad, Cin), jnp.float32),
        compiler_params=pltpu.CompilerParams(
            dimension_semantics=("parallel", "arbitrary"),
            vmem_limit_bytes=vmem_limit),
        cost_estimate=pl.CostEstimate(
            flops=int(flops),
            transcendentals=int(transcendentals),
            bytes_accessed=int(bytes_accessed)),
    )(x_nsc, wt, wp, wg, wz, bn_bias)

    out = out[:, :S, :]
    return jnp.transpose(out.reshape(N, H, W, Cin), (0, 3, 1, 2))


# ----------------------------------------------------------------------------
# Deterministic parameter construction (PyTorch layouts: conv weight = (Cout, Cin))
# ----------------------------------------------------------------------------
def init_spatial_nl_params(key, inplanes, planes):
    ks = jax.random.split(key, 8)
    return {
        't_w': 0.05 * jax.random.normal(ks[0], (planes, inplanes), jnp.float32),
        'p_w': 0.05 * jax.random.normal(ks[1], (planes, inplanes), jnp.float32),
        'g_w': 0.10 * jax.random.normal(ks[2], (planes, inplanes), jnp.float32),
        'z_w': 0.10 * jax.random.normal(ks[3], (inplanes, planes), jnp.float32),
        'bn_gamma': 1.0 + 0.1 * jax.random.normal(ks[4], (inplanes,), jnp.float32),
        'bn_beta': 0.1 * jax.random.normal(ks[5], (inplanes,), jnp.float32),
        'bn_mean': 0.1 * jax.random.normal(ks[6], (inplanes,), jnp.float32),
        'bn_var': jax.random.uniform(ks[7], (inplanes,), jnp.float32, 0.5, 1.5),
        'bn_eps': 1e-5,
    }


# ----------------------------------------------------------------------------
# Pure-JAX f32 reference (mirrors the PyTorch forward exactly) for verification
# ----------------------------------------------------------------------------
def spatial_nl_ref(x, params, use_scale=False):
    HI = jax.lax.Precision.HIGHEST

    def conv1x1(inp, w):  # w: (Cout, Cin)
        return jnp.einsum('nchw,oc->nohw', inp, w, precision=HI)

    t = conv1x1(x, params['t_w'])
    p = conv1x1(x, params['p_w'])
    g = conv1x1(x, params['g_w'])
    b, c, h, w = t.shape
    t2 = jnp.transpose(t.reshape(b, c, h * w), (0, 2, 1))   # (b, s, c)
    p2 = p.reshape(b, c, h * w)                             # (b, c, s)
    g2 = jnp.transpose(g.reshape(b, c, h * w), (0, 2, 1))   # (b, s, c)
    att = jnp.einsum('bqc,bck->bqk', t2, p2, precision=HI)
    if use_scale:
        att = att / (c ** 0.5)
    att = jax.nn.softmax(att, axis=2)
    y = jnp.einsum('bqk,bkc->bqc', att, g2, precision=HI)
    y = jnp.transpose(y, (0, 2, 1)).reshape(b, c, h, w)
    z = conv1x1(y, params['z_w'])
    scale = params['bn_gamma'] / jnp.sqrt(params['bn_var'] + params['bn_eps'])
    bias = params['bn_beta'] - params['bn_mean'] * scale
    z = z * scale[None, :, None, None] + bias[None, :, None, None]
    return z + x


# ----------------------------------------------------------------------------
if __name__ == "__main__":
    key = jax.random.PRNGKey(0)
    kx, kp, kx2 = jax.random.split(key, 3)

    # Lane-friendly demo: batch=2, inplanes=128, planes=64, spatial 16x16.
    N, Cin, Cp, H, W = 2, 128, 64, 16, 16
    x = jax.random.normal(kx, (N, Cin, H, W), jnp.float32)
    params = init_spatial_nl_params(kp, Cin, Cp)

    for use_scale in (False, True):   # module default is False; also exercise scale path
        fwd = jax.jit(functools.partial(spatial_nl_forward,
                                        params=params, use_scale=use_scale))
        out = jax.block_until_ready(fwd(x))
        assert out.shape == (N, Cin, H, W), out.shape

        ref = spatial_nl_ref(x, params, use_scale=use_scale)
        err = float(jnp.max(jnp.abs(out - ref)))
        scale = float(jnp.max(jnp.abs(ref)))
        # bf16 MXU operands (f32 accumulation) -> loosened tolerance vs f32 reference.
        assert err <= 3e-2 * (1.0 + scale), (use_scale, err, scale)

    # Non-divisible spatial size (S=100) exercises the padded / masked-key path.
    H2, W2 = 10, 10
    x2 = jax.random.normal(kx2, (1, Cin, H2, W2), jnp.float32)
    out2 = jax.block_until_ready(
        jax.jit(functools.partial(spatial_nl_forward,
                                  params=params, use_scale=False))(x2))
    assert out2.shape == (1, Cin, H2, W2), out2.shape
    ref2 = spatial_nl_ref(x2, params, use_scale=False)
    err2 = float(jnp.max(jnp.abs(out2 - ref2)))
    scale2 = float(jnp.max(jnp.abs(ref2)))
    assert err2 <= 3e-2 * (1.0 + scale2), (err2, scale2)

    print("KERNEL_OK")
</pallas_src>

<mosaic_0001>
module attributes {stable_mosaic.version = 11 : i64} {
  func.func @_spatial_nl_kernel(%arg0: i32, %arg1: i32, %arg2: memref<1x256x128xf32, #tpu.memory_space<vmem>>, %arg3: memref<128x64xbf16, #tpu.memory_space<vmem>>, %arg4: memref<64x128xbf16, #tpu.memory_space<vmem>>, %arg5: memref<128x64xbf16, #tpu.memory_space<vmem>>, %arg6: memref<64x128xbf16, #tpu.memory_space<vmem>>, %arg7: memref<1x128xf32, #tpu.memory_space<vmem>>, %arg8: memref<1x128x128xf32, #tpu.memory_space<vmem>>, %arg9: memref<64x256xbf16, #tpu.memory_space<vmem>>, %arg10: memref<256x64xbf16, #tpu.memory_space<vmem>>) attributes {dimension_semantics = [#tpu.dimension_semantics<parallel>, #tpu.dimension_semantics<arbitrary>], iteration_bounds = array<i64: 2, 2>, scalar_prefetch = 0 : i64, scratch_operands = 2 : i64, tpu.core_type = #tpu.core_type<tc>, window_params = [{transform_indices = @transform_0, window_bounds = array<i64: 1, 256, 128>}, {pipeline_mode = #tpu.pipeline_mode<synchronous>, transform_indices = @transform_1, window_bounds = array<i64: 128, 64>}, {pipeline_mode = #tpu.pipeline_mode<synchronous>, transform_indices = @transform_2, window_bounds = array<i64: 64, 128>}, {pipeline_mode = #tpu.pipeline_mode<synchronous>, transform_indices = @transform_3, window_bounds = array<i64: 128, 64>}, {pipeline_mode = #tpu.pipeline_mode<synchronous>, transform_indices = @transform_4, window_bounds = array<i64: 64, 128>}, {pipeline_mode = #tpu.pipeline_mode<synchronous>, transform_indices = @transform_5, window_bounds = array<i64: 1, 128>}, {transform_indices = @transform_6, window_bounds = array<i64: 1, 128, 128>}]} {
    %c0_i32 = arith.constant 0 : i32
    %0 = arith.cmpi eq, %arg1, %c0_i32 : i32
    %1 = arith.extui %0 : i1 to i32
    %c0_i32_0 = arith.constant 0 : i32
    %2 = arith.cmpi ne, %1, %c0_i32_0 : i32
    scf.if %2 {
      %c0_20 = arith.constant 0 : index
      %c0_21 = arith.constant 0 : index
      %c0_22 = arith.constant 0 : index
      %37 = vector.load %arg2[%c0_20, %c0_21, %c0_22] : memref<1x256x128xf32, #tpu.memory_space<vmem>>, vector<1x256x128xf32>
      %38 = vector.shape_cast %37 : vector<1x256x128xf32> to vector<256x128xf32>
      %39 = arith.truncf %38 : vector<256x128xf32> to vector<256x128xbf16>
      %c0_23 = arith.constant 0 : index
      %c0_24 = arith.constant 0 : index
      %40 = vector.load %arg4[%c0_23, %c0_24] : memref<64x128xbf16, #tpu.memory_space<vmem>>, vector<64x128xbf16>
      %cst_25 = arith.constant dense<0.000000e+00> : vector<64x256xf32>
      %41 = tpu.matmul %40, %39, %cst_25 {dimension_numbers = #tpu.dot_dimension_numbers<[1], [1], [0], [0], [0, 0, 1, 0], [], []>} : vector<64x128xbf16>, vector<256x128xbf16>, vector<64x256xf32> -> vector<64x256xf32>
      %42 = arith.truncf %41 : vector<64x256xf32> to vector<64x256xbf16>
      %c0_26 = arith.constant 0 : index
      %c0_27 = arith.constant 0 : index
      %43 = vector.load %arg9[%c0_26, %c0_27] : memref<64x256xbf16, #tpu.memory_space<vmem>>, vector<64x256xbf16>
      tpu.vector_store %arg9[%c0_26, %c0_27], %42 {strides = array<i32>} : memref<64x256xbf16, #tpu.memory_space<vmem>>, vector<64x256xbf16>,
      %c0_28 = arith.constant 0 : index
      %c0_29 = arith.constant 0 : index
      %44 = vector.load %arg5[%c0_28, %c0_29] : memref<128x64xbf16, #tpu.memory_space<vmem>>, vector<128x64xbf16>
      %cst_30 = arith.constant dense<0.000000e+00> : vector<256x64xf32>
      %45 = tpu.matmul %39, %44, %cst_30 {dimension_numbers = #tpu.dot_dimension_numbers<[1], [0], [0], [1], [0, 0, 1, 1], [], []>} : vector<256x128xbf16>, vector<128x64xbf16>, vector<256x64xf32> -> vector<256x64xf32>
      %46 = arith.truncf %45 : vector<256x64xf32> to vector<256x64xbf16>
      %c0_31 = arith.constant 0 : index
      %c0_32 = arith.constant 0 : index
      %47 = vector.load %arg10[%c0_31, %c0_32] : memref<256x64xbf16, #tpu.memory_space<vmem>>, vector<256x64xbf16>
      tpu.vector_store %arg10[%c0_31, %c0_32], %46 {strides = array<i32>} : memref<256x64xbf16, #tpu.memory_space<vmem>>, vector<256x64xbf16>,
    } else {
    }
    %c128_i32 = arith.constant 128 : i32
    %3 = arith.muli %arg1, %c128_i32 : i32
    %4 = tpu.assume_multiple %3, 128 : i32
    %c0 = arith.constant 0 : index
    %5 = arith.index_cast %4 : i32 to index
    %c0_1 = arith.constant 0 : index
    %6 = vector.load %arg2[%c0, %5, %c0_1] : memref<1x256x128xf32, #tpu.memory_space<vmem>>, vector<1x128x128xf32>
    %7 = vector.shape_cast %6 : vector<1x128x128xf32> to vector<128x128xf32>
    %8 = arith.truncf %7 : vector<128x128xf32> to vector<128x128xbf16>
    %c0_2 = arith.constant 0 : index
    %c0_3 = arith.constant 0 : index
    %9 = vector.load %arg3[%c0_2, %c0_3] : memref<128x64xbf16, #tpu.memory_space<vmem>>, vector<128x64xbf16>
    %cst = arith.constant dense<0.000000e+00> : vector<128x64xf32>
    %10 = tpu.matmul %8, %9, %cst {dimension_numbers = #tpu.dot_dimension_numbers<[1], [0], [0], [1], [0, 0, 1, 1], [], []>} : vector<128x128xbf16>, vector<128x64xbf16>, vector<128x64xf32> -> vector<128x64xf32>
    %11 = arith.truncf %10 : vector<128x64xf32> to vector<128x64xbf16>
    %c0_4 = arith.constant 0 : index
    %c0_5 = arith.constant 0 : index
    %12 = vector.load %arg9[%c0_4, %c0_5] : memref<64x256xbf16, #tpu.memory_space<vmem>>, vector<64x256xbf16>
    %cst_6 = arith.constant dense<0.000000e+00> : vector<128x256xf32>
    %13 = tpu.matmul %11, %12, %cst_6 {dimension_numbers = #tpu.dot_dimension_numbers<[1], [0], [0], [1], [0, 0, 1, 1], [], []>} : vector<128x64xbf16>, vector<64x256xbf16>, vector<128x256xf32> -> vector<128x256xf32>
    %cst_7 = arith.constant dense<0xFF800000> : vector<128xf32>
    %14 = vector.multi_reduction <maximumf>, %13, %cst_7 [1] : vector<128x256xf32> to vector<128xf32>
    %15 = vector.shape_cast %14 : vector<128xf32> to vector<128x1xf32>
    %16 = vector.broadcast %15 : vector<128x1xf32> to vector<128x256xf32>
    %17 = arith.subf %13, %16 : vector<128x256xf32>
    %18 = math.exp %17 : vector<128x256xf32>
    %cst_8 = arith.constant dense<0.000000e+00> : vector<128xf32>
    %19 = vector.multi_reduction <add>, %18, %cst_8 [1] : vector<128x256xf32> to vector<128xf32>
    %20 = vector.shape_cast %19 : vector<128xf32> to vector<128x1xf32>
    %21 = arith.truncf %18 : vector<128x256xf32> to vector<128x256xbf16>
    %c0_9 = arith.constant 0 : index
    %c0_10 = arith.constant 0 : index
    %22 = vector.load %arg10[%c0_9, %c0_10] : memref<256x64xbf16, #tpu.memory_space<vmem>>, vector<256x64xbf16>
    %cst_11 = arith.constant dense<0.000000e+00> : vector<128x64xf32>
    %23 = tpu.matmul %21, %22, %cst_11 {dimension_numbers = #tpu.dot_dimension_numbers<[1], [0], [0], [1], [0, 0, 1, 1], [], []>} : vector<128x256xbf16>, vector<256x64xbf16>, vector<128x64xf32> -> vector<128x64xf32>
    %24 = tpu.reciprocal %20 {approx = true} : vector<128x1xf32> -> vector<128x1xf32>
    %25 = vector.broadcast %24 : vector<128x1xf32> to vector<128x64xf32>
    %26 = arith.mulf %23, %25 : vector<128x64xf32>
    %27 = arith.truncf %26 : vector<128x64xf32> to vector<128x64xbf16>
    %c0_12 = arith.constant 0 : index
    %c0_13 = arith.constant 0 : index
    %28 = vector.load %arg6[%c0_12, %c0_13] : memref<64x128xbf16, #tpu.memory_space<vmem>>, vector<64x128xbf16>
    %cst_14 = arith.constant dense<0.000000e+00> : vector<128x128xf32>
    %29 = tpu.matmul %27, %28, %cst_14 {dimension_numbers = #tpu.dot_dimension_numbers<[1], [0], [0], [1], [0, 0, 1, 1], [], []>} : vector<128x64xbf16>, vector<64x128xbf16>, vector<128x128xf32> -> vector<128x128xf32>
    %c0_15 = arith.constant 0 : index
    %c0_16 = arith.constant 0 : index
    %30 = vector.load %arg7[%c0_15, %c0_16] : memref<1x128xf32, #tpu.memory_space<vmem>>, vector<1x128xf32>
    %31 = vector.broadcast %30 : vector<1x128xf32> to vector<128x128xf32>
    %32 = arith.addf %29, %31 : vector<128x128xf32>
    %33 = arith.addf %32, %7 : vector<128x128xf32>
    %c0_17 = arith.constant 0 : index
    %c0_18 = arith.constant 0 : index
    %c0_19 = arith.constant 0 : index
    %34 = vector.load %arg8[%c0_17, %c0_18, %c0_19] : memref<1x128x128xf32, #tpu.memory_space<vmem>>, vector<1x128x128xf32>
    %35 = vector.shape_cast %34 : vector<1x128x128xf32> to vector<128x128xf32>
    %36 = vector.shape_cast %33 : vector<128x128xf32> to vector<1x128x128xf32>
    tpu.vector_store %arg8[%c0_17, %c0_18, %c0_19], %36 {strides = array<i32>} : memref<1x128x128xf32, #tpu.memory_space<vmem>>, vector<1x128x128xf32>,
    return
  }
  func.func @transform_0(%arg0: i32, %arg1: i32) -> (i32, i32, i32) {
    %c0_i32 = arith.constant 0 : i32
    %c0_i32_0 = arith.constant 0 : i32
    %c0_i32_1 = arith.constant 0 : i32
    return %arg0, %c0_i32, %c0_i32_0 : i32, i32, i32
  }
  func.func @transform_1(%arg0: i32, %arg1: i32) -> (i32, i32) {
    %c0_i32 = arith.constant 0 : i32
    %c0_i32_0 = arith.constant 0 : i32
    %c0_i32_1 = arith.constant 0 : i32
    return %c0_i32, %c0_i32_0 : i32, i32
  }
  func.func @transform_2(%arg0: i32, %arg1: i32) -> (i32, i32) {
    %c0_i32 = arith.constant 0 : i32
    %c0_i32_0 = arith.constant 0 : i32
    %c0_i32_1 = arith.constant 0 : i32
    return %c0_i32, %c0_i32_0 : i32, i32
  }
  func.func @transform_3(%arg0: i32, %arg1: i32) -> (i32, i32) {
    %c0_i32 = arith.constant 0 : i32
    %c0_i32_0 = arith.constant 0 : i32
    %c0_i32_1 = arith.constant 0 : i32
    return %c0_i32, %c0_i32_0 : i32, i32
  }
  func.func @transform_4(%arg0: i32, %arg1: i32) -> (i32, i32) {
    %c0_i32 = arith.constant 0 : i32
    %c0_i32_0 = arith.constant 0 : i32
    %c0_i32_1 = arith.constant 0 : i32
    return %c0_i32, %c0_i32_0 : i32, i32
  }
  func.func @transform_5(%arg0: i32, %arg1: i32) -> (i32, i32) {
    %c0_i32 = arith.constant 0 : i32
    %c0_i32_0 = arith.constant 0 : i32
    %c0_i32_1 = arith.constant 0 : i32
    return %c0_i32, %c0_i32_0 : i32, i32
  }
  func.func @transform_6(%arg0: i32, %arg1: i32) -> (i32, i32, i32) {
    %c0_i32 = arith.constant 0 : i32
    %c0_i32_0 = arith.constant 0 : i32
    return %arg0, %arg1, %c0_i32 : i32, i32, i32
  }
}

</mosaic_0001>

<llo_original>
// kernel: spatial_nl_forward.1
$region0: #{spatial_nl_forward.1}
  #allocation0 [shape = 'u32[]', space=smem, size = 0x4, offset = 0x4, fixed_abs, tag = 'smem constant byte address 0x4 - core index']
  #allocation1 [shape = 'u32[72,128]{1,0:T(1,128)}', space=vmem, size = 0x9000, scoped, tag = 'internal scratch']
  #allocation2 [shape = 'bf16[64,256]{1,0:T(8,128)(2,1)}', space=vmem, size = 0x8000, scoped, tag = 'scratch operand']
  #allocation3 [shape = 'bf16[256,64]{1,0:T(8,128)(2,1)}', space=vmem, size = 0x10000, scoped, tag = 'scratch operand']
  %s0 = inlined_call_operand.hbm [shape: f32[2,256,128], index: 0, kind: input, shape index: {}]
  %s1 = inlined_call_operand.hbm [shape: bf16[128,64], index: 1, kind: input, shape index: {}]
  %s2 = inlined_call_operand.hbm [shape: bf16[64,128], index: 2, kind: input, shape index: {}]
  %s3 = inlined_call_operand.hbm [shape: bf16[128,64], index: 3, kind: input, shape index: {}]
  %s4 = inlined_call_operand.hbm [shape: bf16[64,128], index: 4, kind: input, shape index: {}]
  %s5 = inlined_call_operand.vmem [shape: f32[1,128], index: 5, kind: input, shape index: {}]
  %s6 = inlined_call_operand.hbm [shape: f32[2,256,128], index: 6, kind: output, shape index: {}]
  %s7 = sld [smem:[#allocation0]]
  $region81: #{spatial_nl_forward.1} parent=0
    _
  %s9 = ssub.s32 1, %s7
  %s10 = scalar_select 0, %s9, %s7
  $region1: #{spatial_nl_forward.1} parent=0
    #allocation4 [shape = 'u8[262144]{0}', space=vmem, size = 0x40000, scoped, tag = 'input window, operand 0']
    #allocation5 [shape = 's32[2]{0}', space=sflag, size = 0x8, scoped, tag = 'scoped memory for spatial_nl_forward.1']
    #allocation6 [shape = 's32[2]{0}', space=sflag, size = 0x8, scoped, tag = 'scoped memory for spatial_nl_forward.1']
    #allocation7 [shape = 'u8[32768]{0}', space=vmem, size = 0x8000, scoped, tag = 'input window, operand 1, single buffered']
    #allocation8 [shape = 's32[1]{0}', space=sflag, size = 0x4, scoped, tag = 'scoped memory for spatial_nl_forward.1']
    #allocation9 [shape = 'u8[16384]{0}', space=vmem, size = 0x4000, scoped, tag = 'input window, operand 2, single buffered']
    #allocation10 [shape = 'u8[32768]{0}', space=vmem, size = 0x8000, scoped, tag = 'input window, operand 3, single buffered']
    #allocation11 [shape = 's32[1]{0}', space=sflag, size = 0x4, scoped, tag = 'scoped memory for spatial_nl_forward.1']
    #allocation12 [shape = 'u8[16384]{0}', space=vmem, size = 0x4000, scoped, tag = 'input window, operand 4, single buffered']
    #allocation13 [shape = 'u8[131072]{0}', space=vmem, size = 0x20000, scoped, tag = 'output window, operand 0']
    %11 = vsyncpa [#allocation5], 0
    %s12 = scalar_lea.sflag [#allocation5], 1
    %13 = vsyncpa %s12, 0
    %14 = vsyncpa [#allocation8], 0
    %15 = vsyncpa [#allocation11], 0
    %16 = vsyncpa [#allocation6], 0
    %s17 = scalar_lea.sflag [#allocation6], 1
    %18 = vsyncpa %s17, 0
    loop: start=0, step=1, limit=6
    $region2: #{spatial_nl_forward.1} parent=1 // loop_pre_header
      _
    $region3: #{spatial_nl_forward.1} parent=1 // loop_header
      %s20 = sphi 0, %s24
      %p21 = scmp.ge.s32.totalorder %s20, 6
      %s27 = sphi 0, %s39
      %s28 = sphi 0, %s35
      %s29 = sphi 0, %s27
      %s30 = sphi 0, %s28
      %s31 = sphi 0, %s29
      %s32 = sphi 0, %s30
      %s42 = sphi 0, %s44
      %s45 = sphi 0, %s42
      %s46 = sphi 0, %s45
      %s62 = sphi 0, %s46
      %s66 = sphi 0, %s66
      %s68 = sphi 0, %s66
      %s69 = sphi 0, %s68
      %s83 = sphi 0, %s69
      %s87 = sphi 0, %s87
      %s89 = sphi 0, %s87
      %s90 = sphi 0, %s89
      %s104 = sphi 0, %s90
      %s108 = sphi 0, %s108
      %s110 = sphi 0, %s108
      %s111 = sphi 0, %s110
      %s125 = sphi 0, %s111
      %s129 = sphi 0, %s129
      %s131 = sphi 0, %s129
      %s132 = sphi 0, %s131
      %s146 = sphi 0, %s132
      %s150 = sphi 0, %s150
      %s152 = sphi 0, %s150
      %s153 = sphi 0, %s152
      %s167 = sphi 0, %s153
      %s175 = sphi 0, %s177
      %s178 = sphi 0, %s175
      %s179 = sphi 0, %s178
      %s195 = sphi 0, %s179
    $region4: #{spatial_nl_forward.1} parent=1 // loop_header_branch
      %23 = sbr.rel (%p21) target = $region8
    $region5: #{spatial_nl_forward.1} parent=1 // loop_body
      %s25 = ssub.s32 %s20, 1
      %s26 = ssub.s32 %s20, 2
      %s33 = sadd.s32 1, %s28
      %p34 = scmp.ge.s32.totalorder %s33, 2
      %s35 = scalar_select %p34, 0, %s33
      %s36 = sadd.s32 1, %s27
      %s37 = scalar_select %p34, %s36, %s27
      %p38 = scmp.ge.s32.totalorder %s37, 2
      %s39 = scalar_select %p38, 0, %s37
      %s40 = ssub.s32 %s27, %s39
      %p41 = scmp.eq.s32.totalorder %s40, 0
      %s43 = sadd.s32 %s42, 1
      %s44 = scalar_select %p41, %s42, %s43
      %p47 = pneg %p41
      %p48 = scmp.eq.s32.totalorder %s20, 3
      %p49 = por %p47, %p48
      %p50 = scmp.ne.s32.totalorder %s42, %s45
      %p51 = scmp.eq.s32.totalorder %s20, 0
      %p52 = por %p50, %p51
      %p53 = scmp.ne.s32.totalorder %s42, %s45
      %p54 = scmp.eq.s32.totalorder %s25, 3
      %p55 = por %p53, %p54
      %p56 = scmp.ne.s32.totalorder %s45, %s46
      %p57 = scmp.eq.s32.totalorder %s25, 0
      %p58 = por %p56, %p57
      %p59 = scmp.ne.s32.totalorder %s45, %s46
      %p60 = scmp.eq.s32.totalorder %s26, 3
      %p61 = por %p59, %p60
      %p63 = scmp.ne.s32.totalorder %s46, %s62
      %p64 = scmp.eq.s32.totalorder %s26, 0
      %p65 = por %p63, %p64
      %s67 = sadd.s32 %s66, 1
      %p70 = scmp.eq.s32.totalorder %s20, 3
      %p71 = scmp.ne.s32.totalorder %s66, %s68
      %p72 = scmp.eq.s32.totalorder %s20, 0
      %p73 = por %p71, %p72
      %p74 = scmp.ne.s32.totalorder %s66, %s68
      %p75 = scmp.eq.s32.totalorder %s25, 3
      %p76 = por %p74, %p75
      %p77 = scmp.ne.s32.totalorder %s68, %s69
      %p78 = scmp.eq.s32.totalorder %s25, 0
      %p79 = por %p77, %p78
      %p80 = scmp.ne.s32.totalorder %s68, %s69
      %p81 = scmp.eq.s32.totalorder %s26, 3
      %p82 = por %p80, %p81
      %p84 = scmp.ne.s32.totalorder %s69, %s83
      %p85 = scmp.eq.s32.totalorder %s26, 0
      %p86 = por %p84, %p85
      %s88 = sadd.s32 %s87, 1
      %p91 = scmp.eq.s32.totalorder %s20, 3
      %p92 = scmp.ne.s32.totalorder %s87, %s89
      %p93 = scmp.eq.s32.totalorder %s20, 0
      %p94 = por %p92, %p93
      %p95 = scmp.ne.s32.totalorder %s87, %s89
      %p96 = scmp.eq.s32.totalorder %s25, 3
      %p97 = por %p95, %p96
      %p98 = scmp.ne.s32.totalorder %s89, %s90
      %p99 = scmp.eq.s32.totalorder %s25, 0
      %p100 = por %p98, %p99
      %p101 = scmp.ne.s32.totalorder %s89, %s90
      %p102 = scmp.eq.s32.totalorder %s26, 3
      %p103 = por %p101, %p102
      %p105 = scmp.ne.s32.totalorder %s90, %s104
      %p106 = scmp.eq.s32.totalorder %s26, 0
      %p107 = por %p105, %p106
      %s109 = sadd.s32 %s108, 1
      %p112 = scmp.eq.s32.totalorder %s20, 3
      %p113 = scmp.ne.s32.totalorder %s108, %s110
      %p114 = scmp.eq.s32.totalorder %s20, 0
      %p115 = por %p113, %p114
      %p116 = scmp.ne.s32.totalorder %s108, %s110
      %p117 = scmp.eq.s32.totalorder %s25, 3
      %p118 = por %p116, %p117
      %p119 = scmp.ne.s32.totalorder %s110, %s111
      %p120 = scmp.eq.s32.totalorder %s25, 0
      %p121 = por %p119, %p120
      %p122 = scmp.ne.s32.totalorder %s110, %s111
      %p123 = scmp.eq.s32.totalorder %s26, 3
      %p124 = por %p122, %p123
      %p126 = scmp.ne.s32.totalorder %s111, %s125
      %p127 = scmp.eq.s32.totalorder %s26, 0
      %p128 = por %p126, %p127
      %s130 = sadd.s32 %s129, 1
      %p133 = scmp.eq.s32.totalorder %s20, 3
      %p134 = scmp.ne.s32.totalorder %s129, %s131
      %p135 = scmp.eq.s32.totalorder %s20, 0
      %p136 = por %p134, %p135
      %p137 = scmp.ne.s32.totalorder %s129, %s131
      %p138 = scmp.eq.s32.totalorder %s25, 3
      %p139 = por %p137, %p138
      %p140 = scmp.ne.s32.totalorder %s131, %s132
      %p141 = scmp.eq.s32.totalorder %s25, 0
      %p142 = por %p140, %p141
      %p143 = scmp.ne.s32.totalorder %s131, %s132
      %p144 = scmp.eq.s32.totalorder %s26, 3
      %p145 = por %p143, %p144
      %p147 = scmp.ne.s32.totalorder %s132, %s146
      %p148 = scmp.eq.s32.totalorder %s26, 0
      %p149 = por %p147, %p148
      %s151 = sadd.s32 %s150, 1
      %p154 = scmp.eq.s32.totalorder %s20, 3
      %p155 = scmp.ne.s32.totalorder %s150, %s152
      %p156 = scmp.eq.s32.totalorder %s20, 0
      %p157 = por %p155, %p156
      %p158 = scmp.ne.s32.totalorder %s150, %s152
      %p159 = scmp.eq.s32.totalorder %s25, 3
      %p160 = por %p158, %p159
      %p161 = scmp.ne.s32.totalorder %s152, %s153
      %p162 = scmp.eq.s32.totalorder %s25, 0
      %p163 = por %p161, %p162
      %p164 = scmp.ne.s32.totalorder %s152, %s153
      %p165 = scmp.eq.s32.totalorder %s26, 3
      %p166 = por %p164, %p165
      %p168 = scmp.ne.s32.totalorder %s153, %s167
      %p169 = scmp.eq.s32.totalorder %s26, 0
      %p170 = por %p168, %p169
      %s171 = ssub.s32 %s27, %s39
      %s172 = ssub.s32 %s28, %s35
      %s173 = sor.u32 %s171, %s172
      %p174 = scmp.eq.s32.totalorder %s173, 0
      %s176 = sadd.s32 %s175, 1
      %s177 = scalar_select %p174, %s175, %s176
      %p180 = pneg %p174
      %p181 = scmp.eq.s32.totalorder %s20, 3
      %p182 = por %p180, %p181
      %p183 = scmp.ne.s32.totalorder %s175, %s178
      %p184 = scmp.eq.s32.totalorder %s20, 0
      %p185 = por %p183, %p184
      %p186 = scmp.ne.s32.totalorder %s175, %s178
      %p187 = scmp.eq.s32.totalorder %s25, 3
      %p188 = por %p186, %p187
      %p189 = scmp.ne.s32.totalorder %s178, %s179
      %p190 = scmp.eq.s32.totalorder %s25, 0
      %p191 = por %p189, %p190
      %p192 = scmp.ne.s32.totalorder %s178, %s179
      %p193 = scmp.eq.s32.totalorder %s26, 3
      %p194 = por %p192, %p193
      %p196 = scmp.ne.s32.totalorder %s179, %s195
      %p197 = scmp.eq.s32.totalorder %s26, 0
      %p198 = por %p196, %p197
      %p199 = scmp.le.s32.totalorder 1, %s20
      %p200 = scmp.lt.s32.totalorder %s20, 5
      %p201 = pnand %p199, %p200
      %p202 = pneg %p201
      // Predicated region
      $region9: #{spatial_nl_forward.1} parent=5 // pred_check
        _
      $region10: #{spatial_nl_forward.1} parent=5 // pred_check_branch
        %204 = sbr.rel (%p201) target = $region12
      $region11: #{spatial_nl_forward.1} parent=5 // pred_region
        %s205 = ssub.s32 %s20, 1
        // Predicated region
        $region13: #{spatial_nl_forward.1} parent=11 // pred_check
          %p206 = pneg %p79
        $region14: #{spatial_nl_forward.1} parent=11 // pred_check_branch
          %208 = sbr.rel (%p206) target = $region16
        $region15: #{spatial_nl_forward.1} parent=11 // pred_region
          %210 = vsyncadd [#allocation8], 0
          %s211 = sshll.u32 %s1, 4
          %s212 = int_to_ptr.hbm [resolvable:$true] %s211
          %s213 = sshll.u32 [#allocation7], 4
          %s214 = int_to_ptr.vmem [resolvable:$true] %s213
          %219 = dma.hbm_to_vmem [thread:$0]  %s212, 1024, %s214, [#allocation8], 64, 64, 4
        $region16: #{spatial_nl_forward.1} parent=11 // pred_fallthru
          _
        // Predicated region
        $region17: #{spatial_nl_forward.1} parent=11 // pred_check
          %p220 = pneg %p100
        $region18: #{spatial_nl_forward.1} parent=11 // pred_check_branch
          %222 = sbr.rel (%p220) target = $region20
        $region19: #{spatial_nl_forward.1} parent=11 // pred_region
          %224 = vsyncadd [#allocation8], 0
          %s225 = sshll.u32 %s2, 4
          %s226 = int_to_ptr.hbm [resolvable:$true] %s225
          %s227 = sshll.u32 [#allocation9], 4
          %s228 = int_to_ptr.vmem [resolvable:$true] %s227
          %233 = dma.hbm_to_vmem [thread:$0]  %s226, 512, %s228, [#allocation8], 64, 64, 4
        $region20: #{spatial_nl_forward.1} parent=11 // pred_fallthru
          _
        // Predicated region
        $region21: #{spatial_nl_forward.1} parent=11 // pred_check
          %p234 = pneg %p121
        $region22: #{spatial_nl_forward.1} parent=11 // pred_check_branch
          %236 = sbr.rel (%p234) target = $region24
        $region23: #{spatial_nl_forward.1} parent=11 // pred_region
          %238 = vsyncadd [#allocation11], 0
          %s239 = sshll.u32 %s3, 4
          %s240 = int_to_ptr.hbm [resolvable:$true] %s239
          %s241 = sshll.u32 [#allocation10], 4
          %s242 = int_to_ptr.vmem [resolvable:$true] %s241
          %247 = dma.hbm_to_vmem [thread:$0]  %s240, 1024, %s242, [#allocation11], 64, 64, 4
        $region24: #{spatial_nl_forward.1} parent=11 // pred_fallthru
          _
        // Predicated region
        $region25: #{spatial_nl_forward.1} parent=11 // pred_check
          %p248 = pneg %p142
        $region26: #{spatial_nl_forward.1} parent=11 // pred_check_branch
          %250 = sbr.rel (%p248) target = $region28
        $region27: #{spatial_nl_forward.1} parent=11 // pred_region
          %252 = vsyncadd [#allocation11], 0
          %s253 = sshll.u32 %s4, 4
          %s254 = int_to_ptr.hbm [resolvable:$true] %s253
          %s255 = sshll.u32 [#allocation12], 4
          %s256 = int_to_ptr.vmem [resolvable:$true] %s255
          %261 = dma.hbm_to_vmem [thread:$0]  %s254, 512, %s256, [#allocation11], 64, 64, 4
        $region28: #{spatial_nl_forward.1} parent=11 // pred_fallthru
          _
        // Predicated region
        $region29: #{spatial_nl_forward.1} parent=11 // pred_check
          %p262 = pneg %p163
        $region30: #{spatial_nl_forward.1} parent=11 // pred_check_branch
          %264 = sbr.rel (%p262) target = $region32
        $region31: #{spatial_nl_forward.1} parent=11 // pred_region
          _
        $region32: #{spatial_nl_forward.1} parent=11 // pred_fallthru
          _
      $region12: #{spatial_nl_forward.1} parent=5 // pred_fallthru
        _
      %p265 = scmp.lt.s32.totalorder %s20, 4
      // Predicated region
      $region33: #{spatial_nl_forward.1} parent=5 // pred_check
        %p266 = pneg %p265
      $region34: #{spatial_nl_forward.1} parent=5 // pred_check_branch
        %268 = sbr.rel (%p266) target = $region36
      $region35: #{spatial_nl_forward.1} parent=5 // pred_region
        // Predicated region
        $region37: #{spatial_nl_forward.1} parent=35 // pred_check
          %p269 = pneg %p52
        $region38: #{spatial_nl_forward.1} parent=35 // pred_check_branch
          %271 = sbr.rel (%p269) target = $region40
        $region39: #{spatial_nl_forward.1} parent=35 // pred_region
          %s272 = sand.u32 %s42, 1
          %s273 = scalar_lea.sflag [#allocation5], %s272
          %s274 = sand.u32 %s42, 1
          %s275 = smul.addr %s274, 256
          %s276 = scalar_lea.vmem [#allocation4], %s275
          %278 = vsyncadd %s273, 0
          %s279 = smul.addr %s27, 32
          %s280 = smul.addr %s279, 8
          %s281 = scalar_lea.hbm %s0, %s280
          %s282 = sshll.u32 %s281, 4
          %s283 = int_to_ptr.hbm [resolvable:$true] %s282
          %s284 = sshll.u32 %s276, 4
          %s285 = int_to_ptr.vmem [resolvable:$true] %s284
          %290 = dma.hbm_to_vmem [thread:$0]  %s283, 4096, %s285, %s273, 128, 128, 8
        $region40: #{spatial_nl_forward.1} parent=35 // pred_fallthru
          _
      $region36: #{spatial_nl_forward.1} parent=5 // pred_fallthru
        _
      %p291 = scmp.le.s32.totalorder 1, %s20
      %p292 = scmp.lt.s32.totalorder %s20, 5
      %p293 = pnand %p291, %p292
      %p294 = pneg %p293
      // Predicated region
      $region41: #{spatial_nl_forward.1} parent=5 // pred_check
        _
      $region42: #{spatial_nl_forward.1} parent=5 // pred_check_branch
        %296 = sbr.rel (%p293) target = $region44
      $region43: #{spatial_nl_forward.1} parent=5 // pred_region
        %s297 = ssub.s32 %s20, 1
        %s298 = sand.u32 %s45, 1
        %s299 = scalar_lea.sflag [#allocation5], %s298
        %s300 = sand.u32 %s45, 1
        %s301 = smul.addr %s300, 256
        %s302 = scalar_lea.vmem [#allocation4], %s301
        // Predicated region
        $region45: #{spatial_nl_forward.1} parent=43 // pred_check
          %p303 = pneg %p58
        $region46: #{spatial_nl_forward.1} parent=43 // pred_check_branch
          %305 = sbr.rel (%p303) target = $region48
        $region47: #{spatial_nl_forward.1} parent=43 // pred_region
          %307 = dma.done %s299, 4096
        $region48: #{spatial_nl_forward.1} parent=43 // pred_fallthru
          _
        // Predicated region
        $region49: #{spatial_nl_forward.1} parent=43 // pred_check
          %p308 = pneg %p79
        $region50: #{spatial_nl_forward.1} parent=43 // pred_check_branch
          %310 = sbr.rel (%p308) target = $region52
        $region51: #{spatial_nl_forward.1} parent=43 // pred_region
          %312 = dma.done [#allocation8], 1024
        $region52: #{spatial_nl_forward.1} parent=43 // pred_fallthru
          _
        // Predicated region
        $region53: #{spatial_nl_forward.1} parent=43 // pred_check
          %p313 = pneg %p100
        $region54: #{spatial_nl_forward.1} parent=43 // pred_check_branch
          %315 = sbr.rel (%p313) target = $region56
        $region55: #{spatial_nl_forward.1} parent=43 // pred_region
          %317 = dma.done [#allocation8], 512
        $region56: #{spatial_nl_forward.1} parent=43 // pred_fallthru
          _
        // Predicated region
        $region57: #{spatial_nl_forward.1} parent=43 // pred_check
          %p318 = pneg %p121
        $region58: #{spatial_nl_forward.1} parent=43 // pred_check_branch
          %320 = sbr.rel (%p318) target = $region60
        $region59: #{spatial_nl_forward.1} parent=43 // pred_region
          %322 = dma.done [#allocation11], 1024
        $region60: #{spatial_nl_forward.1} parent=43 // pred_fallthru
          _
        // Predicated region
        $region61: #{spatial_nl_forward.1} parent=43 // pred_check
          %p323 = pneg %p142
        $region62: #{spatial_nl_forward.1} parent=43 // pred_check_branch
          %325 = sbr.rel (%p323) target = $region64
        $region63: #{spatial_nl_forward.1} parent=43 // pred_region
          %327 = dma.done [#allocation11], 512
        $region64: #{spatial_nl_forward.1} parent=43 // pred_fallthru
          _
        %s328 = sand.u32 %s45, 1
        %s329 = scalar_lea.sflag [#allocation5], %s328
        %s330 = sand.u32 %s45, 1
        %s331 = smul.addr %s330, 256
        %s332 = scalar_lea.vmem [#allocation4], %s331
        %p333 = pneg %p58
        %p334 = pneg %p55
        %p335 = pneg %p79
        %p336 = pneg %p76
        %p337 = pneg %p100
        %p338 = pneg %p97
        %p339 = pneg %p121
        %p340 = pneg %p118
        %p341 = pneg %p142
        %p342 = pneg %p139
        %p343 = pneg %p163
        %p344 = pneg %p160
        %p345 = pneg %p191
        %p346 = pneg %p188
        %s347 = sand.u32 %s178, 1
        %s348 = scalar_lea.sflag [#allocation6], %s347
        %s349 = sand.u32 %s178, 1
        %s350 = smul.addr %s349, 128
        %s351 = scalar_lea.vmem [#allocation13], %s350
        %s352 = smul.u32 16, %s30
        %p354 = scmp.eq.s32.totalorder %s30, 0
        // Predicated region
        $region65: #{spatial_nl_forward.1} parent=43 // pred_check
          %p355 = pneg %p354
        $region66: #{spatial_nl_forward.1} parent=43 // pred_check_branch
          %357 = sbr.rel (%p355) target = $region68
        $region67: #{spatial_nl_forward.1} parent=43 // pred_region
          %v358 = vld [vmem:[%s302] sm:$0xff]
          %v359 = vld [vmem:[%s302 + $0x8] sm:$0xff]
          %v360 = vld [vmem:[%s302 + $0x10] sm:$0xff]
          %v361 = vld [vmem:[%s302 + $0x18] sm:$0xff]
          %v362 = vld [vmem:[%s302 + $0x20] sm:$0xff]
          %v363 = vld [vmem:[%s302 + $0x28] sm:$0xff]
          %v364 = vld [vmem:[%s302 + $0x30] sm:$0xff]
          %v365 = vld [vmem:[%s302 + $0x38] sm:$0xff]
          %v366 = vld [vmem:[%s302 + $0x40] sm:$0xff]
          %v367 = vld [vmem:[%s302 + $0x48] sm:$0xff]
          %v368 = vld [vmem:[%s302 + $0x50] sm:$0xff]
          %v369 = vld [vmem:[%s302 + $0x58] sm:$0xff]
          %v370 = vld [vmem:[%s302 + $0x60] sm:$0xff]
          %v371 = vld [vmem:[%s302 + $0x68] sm:$0xff]
          %v372 = vld [vmem:[%s302 + $0x70] sm:$0xff]
          %v373 = vld [vmem:[%s302 + $0x78] sm:$0xff]
          %v374 = vld [vmem:[%s302 + $0x80] sm:$0xff]
          %v375 = vld [vmem:[%s302 + $0x88] sm:$0xff]
          %v376 = vld [vmem:[%s302 + $0x90] sm:$0xff]
          %v377 = vld [vmem:[%s302 + $0x98] sm:$0xff]
          %v378 = vld [vmem:[%s302 + $0xa0] sm:$0xff]
          %v379 = vld [vmem:[%s302 + $0xa8] sm:$0xff]
          %v380 = vld [vmem:[%s302 + $0xb0] sm:$0xff]
          %v381 = vld [vmem:[%s302 + $0xb8] sm:$0xff]
          %v382 = vld [vmem:[%s302 + $0xc0] sm:$0xff]
          %v383 = vld [vmem:[%s302 + $0xc8] sm:$0xff]
          %v384 = vld [vmem:[%s302 + $0xd0] sm:$0xff]
          %v385 = vld [vmem:[%s302 + $0xd8] sm:$0xff]
          %v386 = vld [vmem:[%s302 + $0xe0] sm:$0xff]
          %v387 = vld [vmem:[%s302 + $0xe8] sm:$0xff]
          %v388 = vld [vmem:[%s302 + $0xf0] sm:$0xff]
          %v389 = vld [vmem:[%s302 + $0xf8] sm:$0xff]
          %v390 = vpack.c.bf16 %v359, %v358
          %v391 = vpack.c.bf16 %v361, %v360
          %v392 = vpack.c.bf16 %v363, %v362
          %v393 = vpack.c.bf16 %v365, %v364
          %v394 = vpack.c.bf16 %v367, %v366
          %v395 = vpack.c.bf16 %v369, %v368
          %v396 = vpack.c.bf16 %v371, %v370
          %v397 = vpack.c.bf16 %v373, %v372
          %v398 = vpack.c.bf16 %v375, %v374
          %v399 = vpack.c.bf16 %v377, %v376
          %v400 = vpack.c.bf16 %v379, %v378
          %v401 = vpack.c.bf16 %v381, %v380
          %v402 = vpack.c.bf16 %v383, %v382
          %v403 = vpack.c.bf16 %v385, %v384
          %v404 = vpack.c.bf16 %v387, %v386
          %v405 = vpack.c.bf16 %v389, %v388
          %v406 = vld [vmem:[#allocation9] sm:$0xf]
          %v407 = vld [vmem:[#allocation9 + $0x4] sm:$0xf]
          %v408 = vld [vmem:[#allocation9 + $0x8] sm:$0xf]
          %v409 = vld [vmem:[#allocation9 + $0xc] sm:$0xf]
          %v410 = vld [vmem:[#allocation9 + $0x10] sm:$0xf]
          %v411 = vld [vmem:[#allocation9 + $0x14] sm:$0xf]
          %v412 = vld [vmem:[#allocation9 + $0x18] sm:$0xf]
          %v413 = vld [vmem:[#allocation9 + $0x1c] sm:$0xf]
          %v422 = vunpack.c.l.b16 %v406
          %v423 = vunpack.c.l.b16 %v407
          %v424 = vunpack.c.l.b16 %v408
          %v425 = vunpack.c.l.b16 %v409
          %v426 = vunpack.c.l.b16 %v410
          %v427 = vunpack.c.l.b16 %v411
          %v428 = vunpack.c.l.b16 %v412
          %v429 = vunpack.c.l.b16 %v413
          %v430 = vpack.c.b16 %v423, %v422
          %v431 = vpack.c.b16 %v425, %v424
          %v432 = vpack.c.b16 %v427, %v426
          %v433 = vpack.c.b16 %v429, %v428
          %438 = vmatpush.bf16.xpose.msra.mxu0 %v397
          %439 = vmatpush.bf16.xpose.msra.mxu0 %v396
          %440 = vmatpush.bf16.xpose.msra.mxu0 %v395
          %441 = vmatpush.bf16.xpose.msra.mxu0 %v394
          %442 = vmatpush.bf16.xpose.msra.mxu0 %v393
          %443 = vmatpush.bf16.xpose.msra.mxu0 %v392
          %444 = vmatpush.bf16.xpose.msra.mxu0 %v391
          %445 = vmatpush.bf16.xpose.msra.mxu0 %v390
          %446 = vmatmul.bf16.gmra.mxu0 %v430
          %v447 = vpop.f32.mrf.mxu0
          %v448 = vadd.f32 0.0, %v447
          %v449 = vpop.f32.mrf.mxu0
          %v450 = vadd.f32 0.0, %v449
          %451 = vmatmul.bf16.gmra.mxu0 %v431
          %v452 = vpop.f32.mrf.mxu0
          %v453 = vadd.f32 0.0, %v452
          %v454 = vpop.f32.mrf.mxu0
          %v455 = vadd.f32 0.0, %v454
          %456 = vmatmul.bf16.gmra.mxu0 %v432
          %v457 = vpop.f32.mrf.mxu0
          %v458 = vadd.f32 0.0, %v457
          %v459 = vpop.f32.mrf.mxu0
          %v460 = vadd.f32 0.0, %v459
          %461 = vmatmul.bf16.gmra.mxu0 %v433
          %v462 = vpop.f32.mrf.mxu0
          %v463 = vadd.f32 0.0, %v462
          %v464 = vpop.f32.mrf.mxu0
          %v465 = vadd.f32 0.0, %v464
          %466 = vdwg.mxu0
          %467 = vmatpush.bf16.xpose.msra.mxu0 %v405
          %468 = vmatpush.bf16.xpose.msra.mxu0 %v404
          %469 = vmatpush.bf16.xpose.msra.mxu0 %v403
          %470 = vmatpush.bf16.xpose.msra.mxu0 %v402
          %471 = vmatpush.bf16.xpose.msra.mxu0 %v401
          %472 = vmatpush.bf16.xpose.msra.mxu0 %v400
          %473 = vmatpush.bf16.xpose.msra.mxu0 %v399
          %474 = vmatpush.bf16.xpose.msra.mxu0 %v398
          %475 = vmatmul.bf16.gmra.mxu0 %v430
          %v476 = vpop.f32.mrf.mxu0
          %v477 = vadd.f32 0.0, %v476
          %v478 = vpop.f32.mrf.mxu0
          %v479 = vadd.f32 0.0, %v478
          %480 = vmatmul.bf16.gmra.mxu0 %v431
          %v481 = vpop.f32.mrf.mxu0
          %v482 = vadd.f32 0.0, %v481
          %v483 = vpop.f32.mrf.mxu0
          %v484 = vadd.f32 0.0, %v483
          %485 = vmatmul.bf16.gmra.mxu0 %v432
          %v486 = vpop.f32.mrf.mxu0
          %v487 = vadd.f32 0.0, %v486
          %v488 = vpop.f32.mrf.mxu0
          %v489 = vadd.f32 0.0, %v488
          %490 = vmatmul.bf16.gmra.mxu0 %v433
          %v491 = vpop.f32.mrf.mxu0
          %v492 = vadd.f32 0.0, %v491
          %v493 = vpop.f32.mrf.mxu0
          %v494 = vadd.f32 0.0, %v493
          %495 = vdwg.mxu0
          %v496 = vpack.c.bf16 %v477, %v448
          %v497 = vpack.c.bf16 %v479, %v450
          %v498 = vpack.c.bf16 %v482, %v453
          %v499 = vpack.c.bf16 %v484, %v455
          %v500 = vpack.c.bf16 %v487, %v458
          %v501 = vpack.c.bf16 %v489, %v460
          %v502 = vpack.c.bf16 %v492, %v463
          %v503 = vpack.c.bf16 %v494, %v465
          %504 = vst [vmem:[#allocation2] sm:$0xff] %v496
          %505 = vst [vmem:[#allocation2 + $0x8] sm:$0xff] %v497
          %506 = vst [vmem:[#allocation2 + $0x10] sm:$0xff] %v498
          %507 = vst [vmem:[#allocation2 + $0x18] sm:$0xff] %v499
          %508 = vst [vmem:[#allocation2 + $0x20] sm:$0xff] %v500
          %509 = vst [vmem:[#allocation2 + $0x28] sm:$0xff] %v501
          %510 = vst [vmem:[#allocation2 + $0x30] sm:$0xff] %v502
          %511 = vst [vmem:[#allocation2 + $0x38] sm:$0xff] %v503
          %v512 = vld [vmem:[#allocation10] sm:$0xf]
          %v513 = vld [vmem:[#allocation10 + $0x4] sm:$0xf]
          %v514 = vld [vmem:[#allocation10 + $0x8] sm:$0xf]
          %v515 = vld [vmem:[#allocation10 + $0xc] sm:$0xf]
          %v516 = vld [vmem:[#allocation10 + $0x10] sm:$0xf]
          %v517 = vld [vmem:[#allocation10 + $0x14] sm:$0xf]
          %v518 = vld [vmem:[#allocation10 + $0x18] sm:$0xf]
          %v519 = vld [vmem:[#allocation10 + $0x1c] sm:$0xf]
          %v520 = vld [vmem:[#allocation10 + $0x20] sm:$0xf]
          %v521 = vld [vmem:[#allocation10 + $0x24] sm:$0xf]
          %v522 = vld [vmem:[#allocation10 + $0x28] sm:$0xf]
          %v523 = vld [vmem:[#allocation10 + $0x2c] sm:$0xf]
          %v524 = vld [vmem:[#allocation10 + $0x30] sm:$0xf]
          %v525 = vld [vmem:[#allocation10 + $0x34] sm:$0xf]
          %v526 = vld [vmem:[#allocation10 + $0x38] sm:$0xf]
          %v527 = vld [vmem:[#allocation10 + $0x3c] sm:$0xf]
          %v544 = vunpack.c.l.b16 %v512
          %v545 = vunpack.c.l.b16 %v513
          %v546 = vunpack.c.l.b16 %v514
          %v547 = vunpack.c.l.b16 %v515
          %v548 = vunpack.c.l.b16 %v516
          %v549 = vunpack.c.l.b16 %v517
          %v550 = vunpack.c.l.b16 %v518
          %v551 = vunpack.c.l.b16 %v519
          %v552 = vunpack.c.l.b16 %v520
          %v553 = vunpack.c.l.b16 %v521
          %v554 = vunpack.c.l.b16 %v522
          %v555 = vunpack.c.l.b16 %v523
          %v556 = vunpack.c.l.b16 %v524
          %v557 = vunpack.c.l.b16 %v525
          %v558 = vunpack.c.l.b16 %v526
          %v559 = vunpack.c.l.b16 %v527
          %v560 = vpack.c.b16 %v545, %v544
          %v561 = vpack.c.b16 %v547, %v546
          %v562 = vpack.c.b16 %v549, %v548
          %v563 = vpack.c.b16 %v551, %v550
          %v564 = vpack.c.b16 %v553, %v552
          %v565 = vpack.c.b16 %v555, %v554
          %v566 = vpack.c.b16 %v557, %v556
          %v567 = vpack.c.b16 %v559, %v558
          %576 = vmatpush.bf16.msra.mxu0 %v567
          %577 = vmatpush.bf16.msra.mxu0 %v566
          %578 = vmatpush.bf16.msra.mxu0 %v565
          %579 = vmatpush.bf16.msra.mxu0 %v564
          %580 = vmatpush.bf16.msra.mxu0 %v563
          %581 = vmatpush.bf16.msra.mxu0 %v562
          %582 = vmatpush.bf16.msra.mxu0 %v561
          %583 = vmatpush.bf16.msra.mxu0 %v560
          %584 = vmatmul.bf16.gmra.mxu0 %v390
          %v585 = vpop.f32.mrf.mxu0
          %v586 = vadd.f32 0.0, %v585
          %v587 = vpop.f32.mrf.mxu0
          %v588 = vadd.f32 0.0, %v587
          %589 = vmatmul.bf16.gmra.mxu0 %v391
          %v590 = vpop.f32.mrf.mxu0
          %v591 = vadd.f32 0.0, %v590
          %v592 = vpop.f32.mrf.mxu0
          %v593 = vadd.f32 0.0, %v592
          %594 = vmatmul.bf16.gmra.mxu0 %v392
          %v595 = vpop.f32.mrf.mxu0
          %v596 = vadd.f32 0.0, %v595
          %v597 = vpop.f32.mrf.mxu0
          %v598 = vadd.f32 0.0, %v597
          %599 = vmatmul.bf16.gmra.mxu0 %v393
          %v600 = vpop.f32.mrf.mxu0
          %v601 = vadd.f32 0.0, %v600
          %v602 = vpop.f32.mrf.mxu0
          %v603 = vadd.f32 0.0, %v602
          %604 = vmatmul.bf16.gmra.mxu0 %v394
          %v605 = vpop.f32.mrf.mxu0
          %v606 = vadd.f32 0.0, %v605
          %v607 = vpop.f32.mrf.mxu0
          %v608 = vadd.f32 0.0, %v607
          %609 = vmatmul.bf16.gmra.mxu0 %v395
          %v610 = vpop.f32.mrf.mxu0
          %v611 = vadd.f32 0.0, %v610
          %v612 = vpop.f32.mrf.mxu0
          %v613 = vadd.f32 0.0, %v612
          %614 = vmatmul.bf16.gmra.mxu0 %v396
          %v615 = vpop.f32.mrf.mxu0
          %v616 = vadd.f32 0.0, %v615
          %v617 = vpop.f32.mrf.mxu0
          %v618 = vadd.f32 0.0, %v617
          %619 = vmatmul.bf16.gmra.mxu0 %v397
          %v620 = vpop.f32.mrf.mxu0
          %v621 = vadd.f32 0.0, %v620
          %v622 = vpop.f32.mrf.mxu0
          %v623 = vadd.f32 0.0, %v622
          %624 = vmatmul.bf16.gmra.mxu0 %v398
          %v625 = vpop.f32.mrf.mxu0
          %v626 = vadd.f32 0.0, %v625
          %v627 = vpop.f32.mrf.mxu0
          %v628 = vadd.f32 0.0, %v627
          %629 = vmatmul.bf16.gmra.mxu0 %v399
          %v630 = vpop.f32.mrf.mxu0
          %v631 = vadd.f32 0.0, %v630
          %v632 = vpop.f32.mrf.mxu0
          %v633 = vadd.f32 0.0, %v632
          %634 = vmatmul.bf16.gmra.mxu0 %v400
          %v635 = vpop.f32.mrf.mxu0
          %v636 = vadd.f32 0.0, %v635
          %v637 = vpop.f32.mrf.mxu0
          %v638 = vadd.f32 0.0, %v637
          %639 = vmatmul.bf16.gmra.mxu0 %v401
          %v640 = vpop.f32.mrf.mxu0
          %v641 = vadd.f32 0.0, %v640
          %v642 = vpop.f32.mrf.mxu0
          %v643 = vadd.f32 0.0, %v642
          %644 = vmatmul.bf16.gmra.mxu0 %v402
          %v645 = vpop.f32.mrf.mxu0
          %v646 = vadd.f32 0.0, %v645
          %v647 = vpop.f32.mrf.mxu0
          %v648 = vadd.f32 0.0, %v647
          %649 = vmatmul.bf16.gmra.mxu0 %v403
          %v650 = vpop.f32.mrf.mxu0
          %v651 = vadd.f32 0.0, %v650
          %v652 = vpop.f32.mrf.mxu0
          %v653 = vadd.f32 0.0, %v652
          %654 = vmatmul.bf16.gmra.mxu0 %v404
          %v655 = vpop.f32.mrf.mxu0
          %v656 = vadd.f32 0.0, %v655
          %v657 = vpop.f32.mrf.mxu0
          %v658 = vadd.f32 0.0, %v657
          %659 = vmatmul.bf16.gmra.mxu0 %v405
          %v660 = vpop.f32.mrf.mxu0
          %v661 = vadd.f32 0.0, %v660
          %v662 = vpop.f32.mrf.mxu0
          %v663 = vadd.f32 0.0, %v662
          %664 = vdwg.mxu0
          %v665 = vpack.c.bf16 %v586, %v586
          %v666 = vpack.c.bf16 %v588, %v588
          %v667 = vpack.c.bf16 %v591, %v591
          %v668 = vpack.c.bf16 %v593, %v593
          %v669 = vpack.c.bf16 %v596, %v596
          %v670 = vpack.c.bf16 %v598, %v598
          %v671 = vpack.c.bf16 %v601, %v601
          %v672 = vpack.c.bf16 %v603, %v603
          %v673 = vpack.c.bf16 %v606, %v606
          %v674 = vpack.c.bf16 %v608, %v608
          %v675 = vpack.c.bf16 %v611, %v611
          %v676 = vpack.c.bf16 %v613, %v613
          %v677 = vpack.c.bf16 %v616, %v616
          %v678 = vpack.c.bf16 %v618, %v618
          %v679 = vpack.c.bf16 %v621, %v621
          %v680 = vpack.c.bf16 %v623, %v623
          %v681 = vpack.c.bf16 %v626, %v626
          %v682 = vpack.c.bf16 %v628, %v628
          %v683 = vpack.c.bf16 %v631, %v631
          %v684 = vpack.c.bf16 %v633, %v633
          %v685 = vpack.c.bf16 %v636, %v636
          %v686 = vpack.c.bf16 %v638, %v638
          %v687 = vpack.c.bf16 %v641, %v641
          %v688 = vpack.c.bf16 %v643, %v643
          %v689 = vpack.c.bf16 %v646, %v646
          %v690 = vpack.c.bf16 %v648, %v648
          %v691 = vpack.c.bf16 %v651, %v651
          %v692 = vpack.c.bf16 %v653, %v653
          %v693 = vpack.c.bf16 %v656, %v656
          %v694 = vpack.c.bf16 %v658, %v658
          %v695 = vpack.c.bf16 %v661, %v661
          %v696 = vpack.c.bf16 %v663, %v663
          %vm697 = vcmask 519168
          %698 = vst.msk [vmem:[#allocation3] sm:$0xf] %vm697, %v665
          %699 = vst.msk [vmem:[#allocation3 + $0x4] sm:$0xf] %vm697, %v666
          %700 = vst.msk [vmem:[#allocation3 + $0x8] sm:$0xf] %vm697, %v667
          %701 = vst.msk [vmem:[#allocation3 + $0xc] sm:$0xf] %vm697, %v668
          %702 = vst.msk [vmem:[#allocation3 + $0x10] sm:$0xf] %vm697, %v669
          %703 = vst.msk [vmem:[#allocation3 + $0x14] sm:$0xf] %vm697, %v670
          %704 = vst.msk [vmem:[#allocation3 + $0x18] sm:$0xf] %vm697, %v671
          %705 = vst.msk [vmem:[#allocation3 + $0x1c] sm:$0xf] %vm697, %v672
          %706 = vst.msk [vmem:[#allocation3 + $0x20] sm:$0xf] %vm697, %v673
          %707 = vst.msk [vmem:[#allocation3 + $0x24] sm:$0xf] %vm697, %v674
          %708 = vst.msk [vmem:[#allocation3 + $0x28] sm:$0xf] %vm697, %v675
          %709 = vst.msk [vmem:[#allocation3 + $0x2c] sm:$0xf] %vm697, %v676
          %710 = vst.msk [vmem:[#allocation3 + $0x30] sm:$0xf] %vm697, %v677
          %711 = vst.msk [vmem:[#allocation3 + $0x34] sm:$0xf] %vm697, %v678
          %712 = vst.msk [vmem:[#allocation3 + $0x38] sm:$0xf] %vm697, %v679
          %713 = vst.msk [vmem:[#allocation3 + $0x3c] sm:$0xf] %vm697, %v680
          %714 = vst.msk [vmem:[#allocation3 + $0x40] sm:$0xf] %vm697, %v681
          %715 = vst.msk [vmem:[#allocation3 + $0x44] sm:$0xf] %vm697, %v682
          %716 = vst.msk [vmem:[#allocation3 + $0x48] sm:$0xf] %vm697, %v683
          %717 = vst.msk [vmem:[#allocation3 + $0x4c] sm:$0xf] %vm697, %v684
          %718 = vst.msk [vmem:[#allocation3 + $0x50] sm:$0xf] %vm697, %v685
          %719 = vst.msk [vmem:[#allocation3 + $0x54] sm:$0xf] %vm697, %v686
          %720 = vst.msk [vmem:[#allocation3 + $0x58] sm:$0xf] %vm697, %v687
          %721 = vst.msk [vmem:[#allocation3 + $0x5c] sm:$0xf] %vm697, %v688
          %722 = vst.msk [vmem:[#allocation3 + $0x60] sm:$0xf] %vm697, %v689
          %723 = vst.msk [vmem:[#allocation3 + $0x64] sm:$0xf] %vm697, %v690
          %724 = vst.msk [vmem:[#allocation3 + $0x68] sm:$0xf] %vm697, %v691
          %725 = vst.msk [vmem:[#allocation3 + $0x6c] sm:$0xf] %vm697, %v692
          %726 = vst.msk [vmem:[#allocation3 + $0x70] sm:$0xf] %vm697, %v693
          %727 = vst.msk [vmem:[#allocation3 + $0x74] sm:$0xf] %vm697, %v694
          %728 = vst.msk [vmem:[#allocation3 + $0x78] sm:$0xf] %vm697, %v695
          %729 = vst.msk [vmem:[#allocation3 + $0x7c] sm:$0xf] %vm697, %v696
        $region68: #{spatial_nl_forward.1} parent=43 // pred_fallthru
          _
        %s730 = smul.u32 %s30, 128
        %s731 = scalar_lea.vmem %s302, %s730 [#allocation4]
        %v732 = vld [vmem:[%s731] sm:$0xff]
        %v733 = vld [vmem:[%s731 + $0x8] sm:$0xff]
        %v734 = vld [vmem:[%s731 + $0x10] sm:$0xff]
        %v735 = vld [vmem:[%s731 + $0x18] sm:$0xff]
        %v736 = vld [vmem:[%s731 + $0x20] sm:$0xff]
        %v737 = vld [vmem:[%s731 + $0x28] sm:$0xff]
        %v738 = vld [vmem:[%s731 + $0x30] sm:$0xff]
        %v739 = vld [vmem:[%s731 + $0x38] sm:$0xff]
        %v740 = vld [vmem:[%s731 + $0x40] sm:$0xff]
        %v741 = vld [vmem:[%s731 + $0x48] sm:$0xff]
        %v742 = vld [vmem:[%s731 + $0x50] sm:$0xff]
        %v743 = vld [vmem:[%s731 + $0x58] sm:$0xff]
        %v744 = vld [vmem:[%s731 + $0x60] sm:$0xff]
        %v745 = vld [vmem:[%s731 + $0x68] sm:$0xff]
        %v746 = vld [vmem:[%s731 + $0x70] sm:$0xff]
        %v747 = vld [vmem:[%s731 + $0x78] sm:$0xff]
        %v748 = vpack.c.bf16 %v733, %v732
        %v749 = vpack.c.bf16 %v735, %v734
        %v750 = vpack.c.bf16 %v737, %v736
        %v751 = vpack.c.bf16 %v739, %v738
        %v752 = vpack.c.bf16 %v741, %v740
        %v753 = vpack.c.bf16 %v743, %v742
        %v754 = vpack.c.bf16 %v745, %v744
        %v755 = vpack.c.bf16 %v747, %v746
        %v756 = vld [vmem:[#allocation7] sm:$0xf]
        %v757 = vld [vmem:[#allocation7 + $0x4] sm:$0xf]
        %v758 = vld [vmem:[#allocation7 + $0x8] sm:$0xf]
        %v759 = vld [vmem:[#allocation7 + $0xc] sm:$0xf]
        %v760 = vld [vmem:[#allocation7 + $0x10] sm:$0xf]
        %v761 = vld [vmem:[#allocation7 + $0x14] sm:$0xf]
        %v762 = vld [vmem:[#allocation7 + $0x18] sm:$0xf]
        %v763 = vld [vmem:[#allocation7 + $0x1c] sm:$0xf]
        %v764 = vld [vmem:[#allocation7 + $0x20] sm:$0xf]
        %v765 = vld [vmem:[#allocation7 + $0x24] sm:$0xf]
        %v766 = vld [vmem:[#allocation7 + $0x28] sm:$0xf]
        %v767 = vld [vmem:[#allocation7 + $0x2c] sm:$0xf]
        %v768 = vld [vmem:[#allocation7 + $0x30] sm:$0xf]
        %v769 = vld [vmem:[#allocation7 + $0x34] sm:$0xf]
        %v770 = vld [vmem:[#allocation7 + $0x38] sm:$0xf]
        %v771 = vld [vmem:[#allocation7 + $0x3c] sm:$0xf]
        %v788 = vunpack.c.l.b16 %v756
        %v789 = vunpack.c.l.b16 %v757
        %v790 = vunpack.c.l.b16 %v758
        %v791 = vunpack.c.l.b16 %v759
        %v792 = vunpack.c.l.b16 %v760
        %v793 = vunpack.c.l.b16 %v761
        %v794 = vunpack.c.l.b16 %v762
        %v795 = vunpack.c.l.b16 %v763
        %v796 = vunpack.c.l.b16 %v764
        %v797 = vunpack.c.l.b16 %v765
        %v798 = vunpack.c.l.b16 %v766
        %v799 = vunpack.c.l.b16 %v767
        %v800 = vunpack.c.l.b16 %v768
        %v801 = vunpack.c.l.b16 %v769
        %v802 = vunpack.c.l.b16 %v770
        %v803 = vunpack.c.l.b16 %v771
        %v804 = vpack.c.b16 %v789, %v788
        %v805 = vpack.c.b16 %v791, %v790
        %v806 = vpack.c.b16 %v793, %v792
        %v807 = vpack.c.b16 %v795, %v794
        %v808 = vpack.c.b16 %v797, %v796
        %v809 = vpack.c.b16 %v799, %v798
        %v810 = vpack.c.b16 %v801, %v800
        %v811 = vpack.c.b16 %v803, %v802
        %820 = vmatpush.bf16.msra.mxu0 %v811
        %821 = vmatpush.bf16.msra.mxu0 %v810
        %822 = vmatpush.bf16.msra.mxu0 %v809
        %823 = vmatpush.bf16.msra.mxu0 %v808
        %824 = vmatpush.bf16.msra.mxu0 %v807
        %825 = vmatpush.bf16.msra.mxu0 %v806
        %826 = vmatpush.bf16.msra.mxu0 %v805
        %827 = vmatpush.bf16.msra.mxu0 %v804
        %828 = vmatmul.bf16.gmra.mxu0 %v748
        %v829 = vpop.f32.mrf.mxu0
        %v830 = vadd.f32 0.0, %v829
        %v831 = vpop.f32.mrf.mxu0
        %v832 = vadd.f32 0.0, %v831
        %833 = vmatmul.bf16.gmra.mxu0 %v749
        %v834 = vpop.f32.mrf.mxu0
        %v835 = vadd.f32 0.0, %v834
        %v836 = vpop.f32.mrf.mxu0
        %v837 = vadd.f32 0.0, %v836
        %838 = vmatmul.bf16.gmra.mxu0 %v750
        %v839 = vpop.f32.mrf.mxu0
        %v840 = vadd.f32 0.0, %v839
        %v841 = vpop.f32.mrf.mxu0
        %v842 = vadd.f32 0.0, %v841
        %843 = vmatmul.bf16.gmra.mxu0 %v751
        %v844 = vpop.f32.mrf.mxu0
        %v845 = vadd.f32 0.0, %v844
        %v846 = vpop.f32.mrf.mxu0
        %v847 = vadd.f32 0.0, %v846
        %848 = vmatmul.bf16.gmra.mxu0 %v752
        %v849 = vpop.f32.mrf.mxu0
        %v850 = vadd.f32 0.0, %v849
        %v851 = vpop.f32.mrf.mxu0
        %v852 = vadd.f32 0.0, %v851
        %853 = vmatmul.bf16.gmra.mxu0 %v753
        %v854 = vpop.f32.mrf.mxu0
        %v855 = vadd.f32 0.0, %v854
        %v856 = vpop.f32.mrf.mxu0
        %v857 = vadd.f32 0.0, %v856
        %858 = vmatmul.bf16.gmra.mxu0 %v754
        %v859 = vpop.f32.mrf.mxu0
        %v860 = vadd.f32 0.0, %v859
        %v861 = vpop.f32.mrf.mxu0
        %v862 = vadd.f32 0.0, %v861
        %863 = vmatmul.bf16.gmra.mxu0 %v755
        %v864 = vpop.f32.mrf.mxu0
        %v865 = vadd.f32 0.0, %v864
        %v866 = vpop.f32.mrf.mxu0
        %v867 = vadd.f32 0.0, %v866
        %868 = vdwg.mxu0
        %v869 = vpack.c.bf16 %v832, %v830
        %v870 = vpack.c.bf16 %v837, %v835
        %v871 = vpack.c.bf16 %v842, %v840
        %v872 = vpack.c.bf16 %v847, %v845
        %v873 = vpack.c.bf16 %v852, %v850
        %v874 = vpack.c.bf16 %v857, %v855
        %v875 = vpack.c.bf16 %v862, %v860
        %v876 = vpack.c.bf16 %v867, %v865
        %v877 = vld [vmem:[#allocation2] sm:$0xff]
        %v878 = vld [vmem:[#allocation2 + $0x8] sm:$0xff]
        %v879 = vld [vmem:[#allocation2 + $0x10] sm:$0xff]
        %v880 = vld [vmem:[#allocation2 + $0x18] sm:$0xff]
        %v881 = vld [vmem:[#allocation2 + $0x20] sm:$0xff]
        %v882 = vld [vmem:[#allocation2 + $0x28] sm:$0xff]
        %v883 = vld [vmem:[#allocation2 + $0x30] sm:$0xff]
        %v884 = vld [vmem:[#allocation2 + $0x38] sm:$0xff]
        %v893 = vunpack.c.l.b16 %v877
        %v894 = vunpack.c.h.b16 %v877
        %v895 = vunpack.c.l.b16 %v878
        %v896 = vunpack.c.h.b16 %v878
        %v897 = vunpack.c.l.b16 %v879
        %v898 = vunpack.c.h.b16 %v879
        %v899 = vunpack.c.l.b16 %v880
        %v900 = vunpack.c.h.b16 %v880
        %v901 = vunpack.c.l.b16 %v881
        %v902 = vunpack.c.h.b16 %v881
        %v903 = vunpack.c.l.b16 %v882
        %v904 = vunpack.c.h.b16 %v882
        %v905 = vunpack.c.l.b16 %v883
        %v906 = vunpack.c.h.b16 %v883
        %v907 = vunpack.c.l.b16 %v884
        %v908 = vunpack.c.h.b16 %v884
        %v909 = vpack.c.b16 %v895, %v893
        %v910 = vpack.c.b16 %v896, %v894
        %v911 = vpack.c.b16 %v899, %v897
        %v912 = vpack.c.b16 %v900, %v898
        %v913 = vpack.c.b16 %v903, %v901
        %v914 = vpack.c.b16 %v904, %v902
        %v915 = vpack.c.b16 %v907, %v905
        %v916 = vpack.c.b16 %v908, %v906
        %vm925 = vcmask 523264
        %v927 = vsel %vm925, %v869, 0
        %v930 = vsel %vm925, %v870, 0
        %v933 = vsel %vm925, %v871, 0
        %v936 = vsel %vm925, %v872, 0
        %v939 = vsel %vm925, %v873, 0
        %v942 = vsel %vm925, %v874, 0
        %v945 = vsel %vm925, %v875, 0
        %v948 = vsel %vm925, %v876, 0
        %950 = vmatpush.bf16.msra.mxu0 0
        %951 = vmatpush.bf16.msra.mxu0 0
        %952 = vmatpush.bf16.msra.mxu0 0
        %953 = vmatpush.bf16.msra.mxu0 0
        %954 = vmatpush.bf16.msra.mxu0 %v915
        %955 = vmatpush.bf16.msra.mxu0 %v913
        %956 = vmatpush.bf16.msra.mxu0 %v911
        %957 = vmatpush.bf16.msra.mxu0 %v909
        %958 = vmatmul.bf16.gmra.mxu0 %v927
        %v959 = vpop.f32.mrf.mxu0
        %v960 = vadd.f32 0.0, %v959
        %v961 = vpop.f32.mrf.mxu0
        %v962 = vadd.f32 0.0, %v961
        %963 = vmatmul.bf16.gmra.mxu0 %v930
        %v964 = vpop.f32.mrf.mxu0
        %v965 = vadd.f32 0.0, %v964
        %v966 = vpop.f32.mrf.mxu0
        %v967 = vadd.f32 0.0, %v966
        %968 = vmatmul.bf16.gmra.mxu0 %v933
        %v969 = vpop.f32.mrf.mxu0
        %v970 = vadd.f32 0.0, %v969
        %v971 = vpop.f32.mrf.mxu0
        %v972 = vadd.f32 0.0, %v971
        %973 = vmatmul.bf16.gmra.mxu0 %v936
        %v974 = vpop.f32.mrf.mxu0
        %v975 = vadd.f32 0.0, %v974
        %v976 = vpop.f32.mrf.mxu0
        %v977 = vadd.f32 0.0, %v976
        %978 = vmatmul.bf16.gmra.mxu0 %v939
        %v979 = vpop.f32.mrf.mxu0
        %v980 = vadd.f32 0.0, %v979
        %v981 = vpop.f32.mrf.mxu0
        %v982 = vadd.f32 0.0, %v981
        %983 = vmatmul.bf16.gmra.mxu0 %v942
        %v984 = vpop.f32.mrf.mxu0
        %v985 = vadd.f32 0.0, %v984
        %v986 = vpop.f32.mrf.mxu0
        %v987 = vadd.f32 0.0, %v986
        %988 = vmatmul.bf16.gmra.mxu0 %v945
        %v989 = vpop.f32.mrf.mxu0
        %v990 = vadd.f32 0.0, %v989
        %v991 = vpop.f32.mrf.mxu0
        %v992 = vadd.f32 0.0, %v991
        %993 = vmatmul.bf16.gmra.mxu0 %v948
        %v994 = vpop.f32.mrf.mxu0
        %v995 = vadd.f32 0.0, %v994
        %v996 = vpop.f32.mrf.mxu0
        %v997 = vadd.f32 0.0, %v996
        %998 = vdwg.mxu0
        %999 = vmatpush.bf16.msra.mxu0 0
        %1000 = vmatpush.bf16.msra.mxu0 0
        %1001 = vmatpush.bf16.msra.mxu0 0
        %1002 = vmatpush.bf16.msra.mxu0 0
        %1003 = vmatpush.bf16.msra.mxu0 %v916
        %1004 = vmatpush.bf16.msra.mxu0 %v914
        %1005 = vmatpush.bf16.msra.mxu0 %v912
        %1006 = vmatpush.bf16.msra.mxu0 %v910
        %1007 = vmatmul.bf16.gmra.mxu0 %v927
        %v1008 = vpop.f32.mrf.mxu0
        %v1009 = vadd.f32 0.0, %v1008
        %v1010 = vpop.f32.mrf.mxu0
        %v1011 = vadd.f32 0.0, %v1010
        %1012 = vmatmul.bf16.gmra.mxu0 %v930
        %v1013 = vpop.f32.mrf.mxu0
        %v1014 = vadd.f32 0.0, %v1013
        %v1015 = vpop.f32.mrf.mxu0
        %v1016 = vadd.f32 0.0, %v1015
        %1017 = vmatmul.bf16.gmra.mxu0 %v933
        %v1018 = vpop.f32.mrf.mxu0
        %v1019 = vadd.f32 0.0, %v1018
        %v1020 = vpop.f32.mrf.mxu0
        %v1021 = vadd.f32 0.0, %v1020
        %1022 = vmatmul.bf16.gmra.mxu0 %v936
        %v1023 = vpop.f32.mrf.mxu0
        %v1024 = vadd.f32 0.0, %v1023
        %v1025 = vpop.f32.mrf.mxu0
        %v1026 = vadd.f32 0.0, %v1025
        %1027 = vmatmul.bf16.gmra.mxu0 %v939
        %v1028 = vpop.f32.mrf.mxu0
        %v1029 = vadd.f32 0.0, %v1028
        %v1030 = vpop.f32.mrf.mxu0
        %v1031 = vadd.f32 0.0, %v1030
        %1032 = vmatmul.bf16.gmra.mxu0 %v942
        %v1033 = vpop.f32.mrf.mxu0
        %v1034 = vadd.f32 0.0, %v1033
        %v1035 = vpop.f32.mrf.mxu0
        %v1036 = vadd.f32 0.0, %v1035
        %1037 = vmatmul.bf16.gmra.mxu0 %v945
        %v1038 = vpop.f32.mrf.mxu0
        %v1039 = vadd.f32 0.0, %v1038
        %v1040 = vpop.f32.mrf.mxu0
        %v1041 = vadd.f32 0.0, %v1040
        %1042 = vmatmul.bf16.gmra.mxu0 %v948
        %v1043 = vpop.f32.mrf.mxu0
        %v1044 = vadd.f32 0.0, %v1043
        %v1045 = vpop.f32.mrf.mxu0
        %v1046 = vadd.f32 0.0, %v1045
        %1047 = vdwg.mxu0
        %v1048 = vmax.f32 %v960, %v1009
        %1049 = vmax.xlane.f32.xlu0 %v1048
        %v1050 = vpop.xlane.xlu0 %1049
        %v1051 = vmax.f32 %v962, %v1011
        %1052 = vmax.xlane.f32.xlu0 %v1051
        %v1053 = vpop.xlane.xlu0 %1052
        %v1054 = vmax.f32 %v965, %v1014
        %1055 = vmax.xlane.f32.xlu0 %v1054
        %v1056 = vpop.xlane.xlu0 %1055
        %v1057 = vmax.f32 %v967, %v1016
        %1058 = vmax.xlane.f32.xlu0 %v1057
        %v1059 = vpop.xlane.xlu0 %1058
        %v1060 = vmax.f32 %v970, %v1019
        %1061 = vmax.xlane.f32.xlu0 %v1060
        %v1062 = vpop.xlane.xlu0 %1061
        %v1063 = vmax.f32 %v972, %v1021
        %1064 = vmax.xlane.f32.xlu0 %v1063
        %v1065 = vpop.xlane.xlu0 %1064
        %v1066 = vmax.f32 %v975, %v1024
        %1067 = vmax.xlane.f32.xlu0 %v1066
        %v1068 = vpop.xlane.xlu0 %1067
        %v1069 = vmax.f32 %v977, %v1026
        %1070 = vmax.xlane.f32.xlu0 %v1069
        %v1071 = vpop.xlane.xlu0 %1070
        %v1072 = vmax.f32 %v980, %v1029
        %1073 = vmax.xlane.f32.xlu0 %v1072
        %v1074 = vpop.xlane.xlu0 %1073
        %v1075 = vmax.f32 %v982, %v1031
        %1076 = vmax.xlane.f32.xlu0 %v1075
        %v1077 = vpop.xlane.xlu0 %1076
        %v1078 = vmax.f32 %v985, %v1034
        %1079 = vmax.xlane.f32.xlu0 %v1078
        %v1080 = vpop.xlane.xlu0 %1079
        %v1081 = vmax.f32 %v987, %v1036
        %1082 = vmax.xlane.f32.xlu0 %v1081
        %v1083 = vpop.xlane.xlu0 %1082
        %v1084 = vmax.f32 %v990, %v1039
        %1085 = vmax.xlane.f32.xlu0 %v1084
        %v1086 = vpop.xlane.xlu0 %1085
        %v1087 = vmax.f32 %v992, %v1041
        %1088 = vmax.xlane.f32.xlu0 %v1087
        %v1089 = vpop.xlane.xlu0 %1088
        %v1090 = vmax.f32 %v995, %v1044
        %1091 = vmax.xlane.f32.xlu0 %v1090
        %v1092 = vpop.xlane.xlu0 %1091
        %v1093 = vmax.f32 %v997, %v1046
        %1094 = vmax.xlane.f32.xlu0 %v1093
        %v1095 = vpop.xlane.xlu0 %1094
        %v1096 = vsub.f32 %v960, %v1050
        %v1097 = vsub.f32 %v1009, %v1050
        %v1098 = vsub.f32 %v962, %v1053
        %v1099 = vsub.f32 %v1011, %v1053
        %v1100 = vsub.f32 %v965, %v1056
        %v1101 = vsub.f32 %v1014, %v1056
        %v1102 = vsub.f32 %v967, %v1059
        %v1103 = vsub.f32 %v1016, %v1059
        %v1104 = vsub.f32 %v970, %v1062
        %v1105 = vsub.f32 %v1019, %v1062
        %v1106 = vsub.f32 %v972, %v1065
        %v1107 = vsub.f32 %v1021, %v1065
        %v1108 = vsub.f32 %v975, %v1068
        %v1109 = vsub.f32 %v1024, %v1068
        %v1110 = vsub.f32 %v977, %v1071
        %v1111 = vsub.f32 %v1026, %v1071
        %v1112 = vsub.f32 %v980, %v1074
        %v1113 = vsub.f32 %v1029, %v1074
        %v1114 = vsub.f32 %v982, %v1077
        %v1115 = vsub.f32 %v1031, %v1077
        %v1116 = vsub.f32 %v985, %v1080
        %v1117 = vsub.f32 %v1034, %v1080
        %v1118 = vsub.f32 %v987, %v1083
        %v1119 = vsub.f32 %v1036, %v1083
        %v1120 = vsub.f32 %v990, %v1086
        %v1121 = vsub.f32 %v1039, %v1086
        %v1122 = vsub.f32 %v992, %v1089
        %v1123 = vsub.f32 %v1041, %v1089
        %v1124 = vsub.f32 %v995, %v1092
        %v1125 = vsub.f32 %v1044, %v1092
        %v1126 = vsub.f32 %v997, %v1095
        %v1127 = vsub.f32 %v1046, %v1095
        %v1128 = vmul.f32 %v1096, 1.442695
        %v1129 = vpow.pop %v1128
        %v1130 = vmul.f32 %v1097, 1.442695
        %v1131 = vpow.pop %v1130
        %v1132 = vmul.f32 %v1098, 1.442695
        %v1133 = vpow.pop %v1132
        %v1134 = vmul.f32 %v1099, 1.442695
        %v1135 = vpow.pop %v1134
        %v1136 = vmul.f32 %v1100, 1.442695
        %v1137 = vpow.pop %v1136
        %v1138 = vmul.f32 %v1101, 1.442695
        %v1139 = vpow.pop %v1138
        %v1140 = vmul.f32 %v1102, 1.442695
        %v1141 = vpow.pop %v1140
        %v1142 = vmul.f32 %v1103, 1.442695
        %v1143 = vpow.pop %v1142
        %v1144 = vmul.f32 %v1104, 1.442695
        %v1145 = vpow.pop %v1144
        %v1146 = vmul.f32 %v1105, 1.442695
        %v1147 = vpow.pop %v1146
        %v1148 = vmul.f32 %v1106, 1.442695
        %v1149 = vpow.pop %v1148
        %v1150 = vmul.f32 %v1107, 1.442695
        %v1151 = vpow.pop %v1150
        %v1152 = vmul.f32 %v1108, 1.442695
        %v1153 = vpow.pop %v1152
        %v1154 = vmul.f32 %v1109, 1.442695
        %v1155 = vpow.pop %v1154
        %v1156 = vmul.f32 %v1110, 1.442695
        %v1157 = vpow.pop %v1156
        %v1158 = vmul.f32 %v1111, 1.442695
        %v1159 = vpow.pop %v1158
        %v1160 = vmul.f32 %v1112, 1.442695
        %v1161 = vpow.pop %v1160
        %v1162 = vmul.f32 %v1113, 1.442695
        %v1163 = vpow.pop %v1162
        %v1164 = vmul.f32 %v1114, 1.442695
        %v1165 = vpow.pop %v1164
        %v1166 = vmul.f32 %v1115, 1.442695
        %v1167 = vpow.pop %v1166
        %v1168 = vmul.f32 %v1116, 1.442695
        %v1169 = vpow.pop %v1168
        %v1170 = vmul.f32 %v1117, 1.442695
        %v1171 = vpow.pop %v1170
        %v1172 = vmul.f32 %v1118, 1.442695
        %v1173 = vpow.pop %v1172
        %v1174 = vmul.f32 %v1119, 1.442695
        %v1175 = vpow.pop %v1174
        %v1176 = vmul.f32 %v1120, 1.442695
        %v1177 = vpow.pop %v1176
        %v1178 = vmul.f32 %v1121, 1.442695
        %v1179 = vpow.pop %v1178
        %v1180 = vmul.f32 %v1122, 1.442695
        %v1181 = vpow.pop %v1180
        %v1182 = vmul.f32 %v1123, 1.442695
        %v1183 = vpow.pop %v1182
        %v1184 = vmul.f32 %v1124, 1.442695
        %v1185 = vpow.pop %v1184
        %v1186 = vmul.f32 %v1125, 1.442695
        %v1187 = vpow.pop %v1186
        %v1188 = vmul.f32 %v1126, 1.442695
        %v1189 = vpow.pop %v1188
        %v1190 = vmul.f32 %v1127, 1.442695
        %v1191 = vpow.pop %v1190
        %v1192 = vadd.f32 %v1129, %v1131
        %1193 = vadd.xlane.f32.xlu0 %v1192
        %v1194 = vpop.xlane.xlu0 %1193
        %v1195 = vadd.f32 %v1133, %v1135
        %1196 = vadd.xlane.f32.xlu0 %v1195
        %v1197 = vpop.xlane.xlu0 %1196
        %v1198 = vadd.f32 %v1137, %v1139
        %1199 = vadd.xlane.f32.xlu0 %v1198
        %v1200 = vpop.xlane.xlu0 %1199
        %v1201 = vadd.f32 %v1141, %v1143
        %1202 = vadd.xlane.f32.xlu0 %v1201
        %v1203 = vpop.xlane.xlu0 %1202
        %v1204 = vadd.f32 %v1145, %v1147
        %1205 = vadd.xlane.f32.xlu0 %v1204
        %v1206 = vpop.xlane.xlu0 %1205
        %v1207 = vadd.f32 %v1149, %v1151
        %1208 = vadd.xlane.f32.xlu0 %v1207
        %v1209 = vpop.xlane.xlu0 %1208
        %v1210 = vadd.f32 %v1153, %v1155
        %1211 = vadd.xlane.f32.xlu0 %v1210
        %v1212 = vpop.xlane.xlu0 %1211
        %v1213 = vadd.f32 %v1157, %v1159
        %1214 = vadd.xlane.f32.xlu0 %v1213
        %v1215 = vpop.xlane.xlu0 %1214
        %v1216 = vadd.f32 %v1161, %v1163
        %1217 = vadd.xlane.f32.xlu0 %v1216
        %v1218 = vpop.xlane.xlu0 %1217
        %v1219 = vadd.f32 %v1165, %v1167
        %1220 = vadd.xlane.f32.xlu0 %v1219
        %v1221 = vpop.xlane.xlu0 %1220
        %v1222 = vadd.f32 %v1169, %v1171
        %1223 = vadd.xlane.f32.xlu0 %v1222
        %v1224 = vpop.xlane.xlu0 %1223
        %v1225 = vadd.f32 %v1173, %v1175
        %1226 = vadd.xlane.f32.xlu0 %v1225
        %v1227 = vpop.xlane.xlu0 %1226
        %v1228 = vadd.f32 %v1177, %v1179
        %1229 = vadd.xlane.f32.xlu0 %v1228
        %v1230 = vpop.xlane.xlu0 %1229
        %v1231 = vadd.f32 %v1181, %v1183
        %1232 = vadd.xlane.f32.xlu0 %v1231
        %v1233 = vpop.xlane.xlu0 %1232
        %v1234 = vadd.f32 %v1185, %v1187
        %1235 = vadd.xlane.f32.xlu0 %v1234
        %v1236 = vpop.xlane.xlu0 %1235
        %v1237 = vadd.f32 %v1189, %v1191
        %1238 = vadd.xlane.f32.xlu0 %v1237
        %v1239 = vpop.xlane.xlu0 %1238
        %v1240 = vpack.c.bf16 %v1133, %v1129
        %v1241 = vpack.c.bf16 %v1135, %v1131
        %v1242 = vpack.c.bf16 %v1141, %v1137
        %v1243 = vpack.c.bf16 %v1143, %v1139
        %v1244 = vpack.c.bf16 %v1149, %v1145
        %v1245 = vpack.c.bf16 %v1151, %v1147
        %v1246 = vpack.c.bf16 %v1157, %v1153
        %v1247 = vpack.c.bf16 %v1159, %v1155
        %v1248 = vpack.c.bf16 %v1165, %v1161
        %v1249 = vpack.c.bf16 %v1167, %v1163
        %v1250 = vpack.c.bf16 %v1173, %v1169
        %v1251 = vpack.c.bf16 %v1175, %v1171
        %v1252 = vpack.c.bf16 %v1181, %v1177
        %v1253 = vpack.c.bf16 %v1183, %v1179
        %v1254 = vpack.c.bf16 %v1189, %v1185
        %v1255 = vpack.c.bf16 %v1191, %v1187
        %v1256 = vld [vmem:[#allocation3] sm:$0xf]
        %v1257 = vld [vmem:[#allocation3 + $0x4] sm:$0xf]
        %v1258 = vld [vmem:[#allocation3 + $0x8] sm:$0xf]
        %v1259 = vld [vmem:[#allocation3 + $0xc] sm:$0xf]
        %v1260 = vld [vmem:[#allocation3 + $0x10] sm:$0xf]
        %v1261 = vld [vmem:[#allocation3 + $0x14] sm:$0xf]
        %v1262 = vld [vmem:[#allocation3 + $0x18] sm:$0xf]
        %v1263 = vld [vmem:[#allocation3 + $0x1c] sm:$0xf]
        %v1264 = vld [vmem:[#allocation3 + $0x20] sm:$0xf]
        %v1265 = vld [vmem:[#allocation3 + $0x24] sm:$0xf]
        %v1266 = vld [vmem:[#allocation3 + $0x28] sm:$0xf]
        %v1267 = vld [vmem:[#allocation3 + $0x2c] sm:$0xf]
        %v1268 = vld [vmem:[#allocation3 + $0x30] sm:$0xf]
        %v1269 = vld [vmem:[#allocation3 + $0x34] sm:$0xf]
        %v1270 = vld [vmem:[#allocation3 + $0x38] sm:$0xf]
        %v1271 = vld [vmem:[#allocation3 + $0x3c] sm:$0xf]
        %v1272 = vld [vmem:[#allocation3 + $0x40] sm:$0xf]
        %v1273 = vld [vmem:[#allocation3 + $0x44] sm:$0xf]
        %v1274 = vld [vmem:[#allocation3 + $0x48] sm:$0xf]
        %v1275 = vld [vmem:[#allocation3 + $0x4c] sm:$0xf]
        %v1276 = vld [vmem:[#allocation3 + $0x50] sm:$0xf]
        %v1277 = vld [vmem:[#allocation3 + $0x54] sm:$0xf]
        %v1278 = vld [vmem:[#allocation3 + $0x58] sm:$0xf]
        %v1279 = vld [vmem:[#allocation3 + $0x5c] sm:$0xf]
        %v1280 = vld [vmem:[#allocation3 + $0x60] sm:$0xf]
        %v1281 = vld [vmem:[#allocation3 + $0x64] sm:$0xf]
        %v1282 = vld [vmem:[#allocation3 + $0x68] sm:$0xf]
        %v1283 = vld [vmem:[#allocation3 + $0x6c] sm:$0xf]
        %v1284 = vld [vmem:[#allocation3 + $0x70] sm:$0xf]
        %v1285 = vld [vmem:[#allocation3 + $0x74] sm:$0xf]
        %v1286 = vld [vmem:[#allocation3 + $0x78] sm:$0xf]
        %v1287 = vld [vmem:[#allocation3 + $0x7c] sm:$0xf]
        %v1320 = vunpack.c.l.b16 %v1256
        %v1321 = vunpack.c.l.b16 %v1257
        %v1322 = vunpack.c.l.b16 %v1258
        %v1323 = vunpack.c.l.b16 %v1259
        %v1324 = vunpack.c.l.b16 %v1260
        %v1325 = vunpack.c.l.b16 %v1261
        %v1326 = vunpack.c.l.b16 %v1262
        %v1327 = vunpack.c.l.b16 %v1263
        %v1328 = vunpack.c.l.b16 %v1264
        %v1329 = vunpack.c.l.b16 %v1265
        %v1330 = vunpack.c.l.b16 %v1266
        %v1331 = vunpack.c.l.b16 %v1267
        %v1332 = vunpack.c.l.b16 %v1268
        %v1333 = vunpack.c.l.b16 %v1269
        %v1334 = vunpack.c.l.b16 %v1270
        %v1335 = vunpack.c.l.b16 %v1271
        %v1336 = vunpack.c.l.b16 %v1272
        %v1337 = vunpack.c.l.b16 %v1273
        %v1338 = vunpack.c.l.b16 %v1274
        %v1339 = vunpack.c.l.b16 %v1275
        %v1340 = vunpack.c.l.b16 %v1276
        %v1341 = vunpack.c.l.b16 %v1277
        %v1342 = vunpack.c.l.b16 %v1278
        %v1343 = vunpack.c.l.b16 %v1279
        %v1344 = vunpack.c.l.b16 %v1280
        %v1345 = vunpack.c.l.b16 %v1281
        %v1346 = vunpack.c.l.b16 %v1282
        %v1347 = vunpack.c.l.b16 %v1283
        %v1348 = vunpack.c.l.b16 %v1284
        %v1349 = vunpack.c.l.b16 %v1285
        %v1350 = vunpack.c.l.b16 %v1286
        %v1351 = vunpack.c.l.b16 %v1287
        %v1352 = vpack.c.b16 %v1321, %v1320
        %v1353 = vpack.c.b16 %v1323, %v1322
        %v1354 = vpack.c.b16 %v1325, %v1324
        %v1355 = vpack.c.b16 %v1327, %v1326
        %v1356 = vpack.c.b16 %v1329, %v1328
        %v1357 = vpack.c.b16 %v1331, %v1330
        %v1358 = vpack.c.b16 %v1333, %v1332
        %v1359 = vpack.c.b16 %v1335, %v1334
        %v1360 = vpack.c.b16 %v1337, %v1336
        %v1361 = vpack.c.b16 %v1339, %v1338
        %v1362 = vpack.c.b16 %v1341, %v1340
        %v1363 = vpack.c.b16 %v1343, %v1342
        %v1364 = vpack.c.b16 %v1345, %v1344
        %v1365 = vpack.c.b16 %v1347, %v1346
        %v1366 = vpack.c.b16 %v1349, %v1348
        %v1367 = vpack.c.b16 %v1351, %v1350
        %1384 = vmatpush.bf16.msra.mxu0 %v1359
        %1385 = vmatpush.bf16.msra.mxu0 %v1358
        %1386 = vmatpush.bf16.msra.mxu0 %v1357
        %1387 = vmatpush.bf16.msra.mxu0 %v1356
        %1388 = vmatpush.bf16.msra.mxu0 %v1355
        %1389 = vmatpush.bf16.msra.mxu0 %v1354
        %1390 = vmatpush.bf16.msra.mxu0 %v1353
        %1391 = vmatpush.bf16.msra.mxu0 %v1352
        %1392 = vmatmul.bf16.gmra.mxu0 %v1240
        %v1393 = vpop.f32.mrf.mxu0
        %v1394 = vadd.f32 0.0, %v1393
        %v1395 = vpop.f32.mrf.mxu0
        %v1396 = vadd.f32 0.0, %v1395
        %1397 = vmatmul.bf16.gmra.mxu0 %v1242
        %v1398 = vpop.f32.mrf.mxu0
        %v1399 = vadd.f32 0.0, %v1398
        %v1400 = vpop.f32.mrf.mxu0
        %v1401 = vadd.f32 0.0, %v1400
        %1402 = vmatmul.bf16.gmra.mxu0 %v1244
        %v1403 = vpop.f32.mrf.mxu0
        %v1404 = vadd.f32 0.0, %v1403
        %v1405 = vpop.f32.mrf.mxu0
        %v1406 = vadd.f32 0.0, %v1405
        %1407 = vmatmul.bf16.gmra.mxu0 %v1246
        %v1408 = vpop.f32.mrf.mxu0
        %v1409 = vadd.f32 0.0, %v1408
        %v1410 = vpop.f32.mrf.mxu0
        %v1411 = vadd.f32 0.0, %v1410
        %1412 = vmatmul.bf16.gmra.mxu0 %v1248
        %v1413 = vpop.f32.mrf.mxu0
        %v1414 = vadd.f32 0.0, %v1413
        %v1415 = vpop.f32.mrf.mxu0
        %v1416 = vadd.f32 0.0, %v1415
        %1417 = vmatmul.bf16.gmra.mxu0 %v1250
        %v1418 = vpop.f32.mrf.mxu0
        %v1419 = vadd.f32 0.0, %v1418
        %v1420 = vpop.f32.mrf.mxu0
        %v1421 = vadd.f32 0.0, %v1420
        %1422 = vmatmul.bf16.gmra.mxu0 %v1252
        %v1423 = vpop.f32.mrf.mxu0
        %v1424 = vadd.f32 0.0, %v1423
        %v1425 = vpop.f32.mrf.mxu0
        %v1426 = vadd.f32 0.0, %v1425
        %1427 = vmatmul.bf16.gmra.mxu0 %v1254
        %v1428 = vpop.f32.mrf.mxu0
        %v1429 = vadd.f32 0.0, %v1428
        %v1430 = vpop.f32.mrf.mxu0
        %v1431 = vadd.f32 0.0, %v1430
        %1432 = vdwg.mxu0
        %1433 = vmatpush.bf16.msra.mxu0 %v1367
        %1434 = vmatpush.bf16.msra.mxu0 %v1366
        %1435 = vmatpush.bf16.msra.mxu0 %v1365
        %1436 = vmatpush.bf16.msra.mxu0 %v1364
        %1437 = vmatpush.bf16.msra.mxu0 %v1363
        %1438 = vmatpush.bf16.msra.mxu0 %v1362
        %1439 = vmatpush.bf16.msra.mxu0 %v1361
        %1440 = vmatpush.bf16.msra.mxu0 %v1360
        %1441 = vmatmul.bf16.gmra.mxu0 %v1241
        %v1442 = vpop.f32.mrf.mxu0
        %v1443 = vadd.f32 %v1394, %v1442
        %v1444 = vpop.f32.mrf.mxu0
        %v1445 = vadd.f32 %v1396, %v1444
        %1446 = vmatmul.bf16.gmra.mxu0 %v1243
        %v1447 = vpop.f32.mrf.mxu0
        %v1448 = vadd.f32 %v1399, %v1447
        %v1449 = vpop.f32.mrf.mxu0
        %v1450 = vadd.f32 %v1401, %v1449
        %1451 = vmatmul.bf16.gmra.mxu0 %v1245
        %v1452 = vpop.f32.mrf.mxu0
        %v1453 = vadd.f32 %v1404, %v1452
        %v1454 = vpop.f32.mrf.mxu0
        %v1455 = vadd.f32 %v1406, %v1454
        %1456 = vmatmul.bf16.gmra.mxu0 %v1247
        %v1457 = vpop.f32.mrf.mxu0
        %v1458 = vadd.f32 %v1409, %v1457
        %v1459 = vpop.f32.mrf.mxu0
        %v1460 = vadd.f32 %v1411, %v1459
        %1461 = vmatmul.bf16.gmra.mxu0 %v1249
        %v1462 = vpop.f32.mrf.mxu0
        %v1463 = vadd.f32 %v1414, %v1462
        %v1464 = vpop.f32.mrf.mxu0
        %v1465 = vadd.f32 %v1416, %v1464
        %1466 = vmatmul.bf16.gmra.mxu0 %v1251
        %v1467 = vpop.f32.mrf.mxu0
        %v1468 = vadd.f32 %v1419, %v1467
        %v1469 = vpop.f32.mrf.mxu0
        %v1470 = vadd.f32 %v1421, %v1469
        %1471 = vmatmul.bf16.gmra.mxu0 %v1253
        %v1472 = vpop.f32.mrf.mxu0
        %v1473 = vadd.f32 %v1424, %v1472
        %v1474 = vpop.f32.mrf.mxu0
        %v1475 = vadd.f32 %v1426, %v1474
        %1476 = vmatmul.bf16.gmra.mxu0 %v1255
        %v1477 = vpop.f32.mrf.mxu0
        %v1478 = vadd.f32 %v1429, %v1477
        %v1479 = vpop.f32.mrf.mxu0
        %v1480 = vadd.f32 %v1431, %v1479
        %1481 = vdwg.mxu0
        %v1482 = vrcp.pop %v1194
        %v1483 = vrcp.pop %v1197
        %v1484 = vrcp.pop %v1200
        %v1485 = vrcp.pop %v1203
        %v1486 = vrcp.pop %v1206
        %v1487 = vrcp.pop %v1209
        %v1488 = vrcp.pop %v1212
        %v1489 = vrcp.pop %v1215
        %v1490 = vrcp.pop %v1218
        %v1491 = vrcp.pop %v1221
        %v1492 = vrcp.pop %v1224
        %v1493 = vrcp.pop %v1227
        %v1494 = vrcp.pop %v1230
        %v1495 = vrcp.pop %v1233
        %v1496 = vrcp.pop %v1236
        %v1497 = vrcp.pop %v1239
        %v1498 = vmul.f32 %v1443, %v1482
        %v1499 = vmul.f32 %v1445, %v1483
        %v1500 = vmul.f32 %v1448, %v1484
        %v1501 = vmul.f32 %v1450, %v1485
        %v1502 = vmul.f32 %v1453, %v1486
        %v1503 = vmul.f32 %v1455, %v1487
        %v1504 = vmul.f32 %v1458, %v1488
        %v1505 = vmul.f32 %v1460, %v1489
        %v1506 = vmul.f32 %v1463, %v1490
        %v1507 = vmul.f32 %v1465, %v1491
        %v1508 = vmul.f32 %v1468, %v1492
        %v1509 = vmul.f32 %v1470, %v1493
        %v1510 = vmul.f32 %v1473, %v1494
        %v1511 = vmul.f32 %v1475, %v1495
        %v1512 = vmul.f32 %v1478, %v1496
        %v1513 = vmul.f32 %v1480, %v1497
        %v1514 = vpack.c.bf16 %v1499, %v1498
        %v1515 = vpack.c.bf16 %v1501, %v1500
        %v1516 = vpack.c.bf16 %v1503, %v1502
        %v1517 = vpack.c.bf16 %v1505, %v1504
        %v1518 = vpack.c.bf16 %v1507, %v1506
        %v1519 = vpack.c.bf16 %v1509, %v1508
        %v1520 = vpack.c.bf16 %v1511, %v1510
        %v1521 = vpack.c.bf16 %v1513, %v1512
        %v1522 = vld [vmem:[#allocation12] sm:$0xf]
        %v1523 = vld [vmem:[#allocation12 + $0x4] sm:$0xf]
        %v1524 = vld [vmem:[#allocation12 + $0x8] sm:$0xf]
        %v1525 = vld [vmem:[#allocation12 + $0xc] sm:$0xf]
        %v1526 = vld [vmem:[#allocation12 + $0x10] sm:$0xf]
        %v1527 = vld [vmem:[#allocation12 + $0x14] sm:$0xf]
        %v1528 = vld [vmem:[#allocation12 + $0x18] sm:$0xf]
        %v1529 = vld [vmem:[#allocation12 + $0x1c] sm:$0xf]
        %v1530 = vld [vmem:[%s5] sm:$0x1]
        %v1532 = vperm.slane %v1530, 0
        %v1542 = vunpack.c.l.b16 %v1522
        %v1543 = vunpack.c.l.b16 %v1523
        %v1544 = vunpack.c.l.b16 %v1524
        %v1545 = vunpack.c.l.b16 %v1525
        %v1546 = vunpack.c.l.b16 %v1526
        %v1547 = vunpack.c.l.b16 %v1527
        %v1548 = vunpack.c.l.b16 %v1528
        %v1549 = vunpack.c.l.b16 %v1529
        %v1550 = vpack.c.b16 %v1543, %v1542
        %v1551 = vpack.c.b16 %v1545, %v1544
        %v1552 = vpack.c.b16 %v1547, %v1546
        %v1553 = vpack.c.b16 %v1549, %v1548
        %v1559 = vsel %vm925, %v1514, 0
        %v1562 = vsel %vm925, %v1515, 0
        %v1565 = vsel %vm925, %v1516, 0
        %v1568 = vsel %vm925, %v1517, 0
        %v1571 = vsel %vm925, %v1518, 0
        %v1574 = vsel %vm925, %v1519, 0
        %v1577 = vsel %vm925, %v1520, 0
        %v1580 = vsel %vm925, %v1521, 0
        %1582 = vmatpush.bf16.msra.mxu0 0
        %1583 = vmatpush.bf16.msra.mxu0 0
        %1584 = vmatpush.bf16.msra.mxu0 0
        %1585 = vmatpush.bf16.msra.mxu0 0
        %1586 = vmatpush.bf16.msra.mxu0 %v1553
        %1587 = vmatpush.bf16.msra.mxu0 %v1552
        %1588 = vmatpush.bf16.msra.mxu0 %v1551
        %1589 = vmatpush.bf16.msra.mxu0 %v1550
        %1590 = vmatmul.bf16.gmra.mxu0 %v1559
        %v1591 = vpop.f32.mrf.mxu0
        %v1592 = vadd.f32 %v1532, %v1591
        %v1593 = vpop.f32.mrf.mxu0
        %v1594 = vadd.f32 %v1532, %v1593
        %1595 = vmatmul.bf16.gmra.mxu0 %v1562
        %v1596 = vpop.f32.mrf.mxu0
        %v1597 = vadd.f32 %v1532, %v1596
        %v1598 = vpop.f32.mrf.mxu0
        %v1599 = vadd.f32 %v1532, %v1598
        %1600 = vmatmul.bf16.gmra.mxu0 %v1565
        %v1601 = vpop.f32.mrf.mxu0
        %v1602 = vadd.f32 %v1532, %v1601
        %v1603 = vpop.f32.mrf.mxu0
        %v1604 = vadd.f32 %v1532, %v1603
        %1605 = vmatmul.bf16.gmra.mxu0 %v1568
        %v1606 = vpop.f32.mrf.mxu0
        %v1607 = vadd.f32 %v1532, %v1606
        %v1608 = vpop.f32.mrf.mxu0
        %v1609 = vadd.f32 %v1532, %v1608
        %1610 = vmatmul.bf16.gmra.mxu0 %v1571
        %v1611 = vpop.f32.mrf.mxu0
        %v1612 = vadd.f32 %v1532, %v1611
        %v1613 = vpop.f32.mrf.mxu0
        %v1614 = vadd.f32 %v1532, %v1613
        %1615 = vmatmul.bf16.gmra.mxu0 %v1574
        %v1616 = vpop.f32.mrf.mxu0
        %v1617 = vadd.f32 %v1532, %v1616
        %v1618 = vpop.f32.mrf.mxu0
        %v1619 = vadd.f32 %v1532, %v1618
        %1620 = vmatmul.bf16.gmra.mxu0 %v1577
        %v1621 = vpop.f32.mrf.mxu0
        %v1622 = vadd.f32 %v1532, %v1621
        %v1623 = vpop.f32.mrf.mxu0
        %v1624 = vadd.f32 %v1532, %v1623
        %1625 = vmatmul.bf16.gmra.mxu0 %v1580
        %v1626 = vpop.f32.mrf.mxu0
        %v1627 = vadd.f32 %v1532, %v1626
        %v1628 = vpop.f32.mrf.mxu0
        %v1629 = vadd.f32 %v1532, %v1628
        %1630 = vdwg.mxu0
        %v1631 = vadd.f32 %v1592, %v732
        %v1632 = vadd.f32 %v1594, %v733
        %v1633 = vadd.f32 %v1597, %v734
        %v1634 = vadd.f32 %v1599, %v735
        %v1635 = vadd.f32 %v1602, %v736
        %v1636 = vadd.f32 %v1604, %v737
        %v1637 = vadd.f32 %v1607, %v738
        %v1638 = vadd.f32 %v1609, %v739
        %v1639 = vadd.f32 %v1612, %v740
        %v1640 = vadd.f32 %v1614, %v741
        %v1641 = vadd.f32 %v1617, %v742
        %v1642 = vadd.f32 %v1619, %v743
        %v1643 = vadd.f32 %v1622, %v744
        %v1644 = vadd.f32 %v1624, %v745
        %v1645 = vadd.f32 %v1627, %v746
        %v1646 = vadd.f32 %v1629, %v747
        %1647 = vst [vmem:[%s351] sm:$0xff] %v1631
        %1648 = vst [vmem:[%s351 + $0x8] sm:$0xff] %v1632
        %1649 = vst [vmem:[%s351 + $0x10] sm:$0xff] %v1633
        %1650 = vst [vmem:[%s351 + $0x18] sm:$0xff] %v1634
        %1651 = vst [vmem:[%s351 + $0x20] sm:$0xff] %v1635
        %1652 = vst [vmem:[%s351 + $0x28] sm:$0xff] %v1636
        %1653 = vst [vmem:[%s351 + $0x30] sm:$0xff] %v1637
        %1654 = vst [vmem:[%s351 + $0x38] sm:$0xff] %v1638
        %1655 = vst [vmem:[%s351 + $0x40] sm:$0xff] %v1639
        %1656 = vst [vmem:[%s351 + $0x48] sm:$0xff] %v1640
        %1657 = vst [vmem:[%s351 + $0x50] sm:$0xff] %v1641
        %1658 = vst [vmem:[%s351 + $0x58] sm:$0xff] %v1642
        %1659 = vst [vmem:[%s351 + $0x60] sm:$0xff] %v1643
        %1660 = vst [vmem:[%s351 + $0x68] sm:$0xff] %v1644
        %1661 = vst [vmem:[%s351 + $0x70] sm:$0xff] %v1645
        %1662 = vst [vmem:[%s351 + $0x78] sm:$0xff] %v1646
        %s1663 = sand.u32 %s178, 1
        %s1664 = scalar_lea.sflag [#allocation6], %s1663
        %s1665 = sand.u32 %s178, 1
        %s1666 = smul.addr %s1665, 128
        %s1667 = scalar_lea.vmem [#allocation13], %s1666
        // Predicated region
        $region69: #{spatial_nl_forward.1} parent=43 // pred_check
          %p1668 = pneg %p188
        $region70: #{spatial_nl_forward.1} parent=43 // pred_check_branch
          %1670 = sbr.rel (%p1668) target = $region72
        $region71: #{spatial_nl_forward.1} parent=43 // pred_region
          %s1671 = smul.u32 16, %s30
          %1673 = vsyncadd %s1664, 0
          %s1674 = smul.addr %s29, 32
          %s1675 = sadd.s32 %s1671, %s1674
          %s1676 = smul.addr %s1675, 8
          %s1677 = scalar_lea.hbm %s6, %s1676
          %s1678 = sshll.u32 %s1667, 4
          %s1679 = int_to_ptr.vmem [resolvable:$true] %s1678
          %s1680 = sshll.u32 %s1677, 4
          %s1681 = int_to_ptr.hbm [resolvable:$true] %s1680
          %1686 = dma.vmem_to_hbm [thread:$0]  %s1679, 2048, %s1681, %s1664, 128, 128, 8
        $region72: #{spatial_nl_forward.1} parent=43 // pred_fallthru
          _
      $region44: #{spatial_nl_forward.1} parent=5 // pred_fallthru
        _
      %p1687 = scmp.le.s32.totalorder 2, %s20
      // Predicated region
      $region73: #{spatial_nl_forward.1} parent=5 // pred_check
        %p1688 = pneg %p1687
      $region74: #{spatial_nl_forward.1} parent=5 // pred_check_branch
        %1690 = sbr.rel (%p1688) target = $region76
      $region75: #{spatial_nl_forward.1} parent=5 // pred_region
        %s1691 = ssub.s32 %s20, 2
        // Predicated region
        $region77: #{spatial_nl_forward.1} parent=75 // pred_check
          %p1692 = pneg %p194
        $region78: #{spatial_nl_forward.1} parent=75 // pred_check_branch
          %1694 = sbr.rel (%p1692) target = $region80
        $region79: #{spatial_nl_forward.1} parent=75 // pred_region
          %s1695 = sand.u32 %s179, 1
          %s1696 = scalar_lea.sflag [#allocation6], %s1695
          %s1697 = sand.u32 %s179, 1
          %s1698 = smul.addr %s1697, 128
          %s1699 = scalar_lea.vmem [#allocation13], %s1698
          %1701 = dma.done %s1696, 2048
        $region80: #{spatial_nl_forward.1} parent=75 // pred_fallthru
          _
      $region76: #{spatial_nl_forward.1} parent=5 // pred_fallthru
        _
    $region6: #{spatial_nl_forward.1} parent=1 // loop_footer
      %s24 = sadd.s32 1, %s20
    $region7: #{spatial_nl_forward.1} parent=1 // loop_footer_branch
      %19 = sbr.rel target = $region3
    $region8: #{spatial_nl_forward.1} parent=1 // loop_exit
      _
    %1702 = vsyncpa [#allocation5], 1
    %s1703 = scalar_lea.sflag [#allocation5], 1
    %1704 = vsyncpa %s1703, 1
    %1705 = vsyncpa [#allocation8], 1
    %1706 = vsyncpa [#allocation11], 1
    %1707 = vsyncpa [#allocation6], 1
    %s1708 = scalar_lea.sflag [#allocation6], 1
    %1709 = vsyncpa %s1708, 1

</llo_original>
